<compile_context>
chip_gen: v7x
topology: tpu7x:2x2x1
jax: 0.10.0
libtpu: 0.0.40
codegen_flags: <defaults>
</compile_context>

<pallas_src>
import functools

import jax
import jax.numpy as jnp
from jax.experimental import pallas as pl
from jax.experimental.pallas import tpu as pltpu

SUBLANE = 8            # second-to-last block dim must be a multiple of this
PREFERRED_TM = 512     # ~85% of HBM roofline for streaming kernels


def _round_up(x, m):
    return ((x + m - 1) // m) * m


def _mlp_kernel(num_layers, x_ref, *refs):
    """relu(x @ W_i + b_i) for i < L-1, plain linear for the last layer.

    refs = (w0, b0, w1, b1, ..., w_{L-1}, b_{L-1}, o_ref).  Every intermediate
    activation stays as a VMEM-resident value inside this single kernel body.

    NOTE: the edge row-block may contain out-of-bounds garbage rows (cdiv
    grid, no wrapper row-pad).  Every op here is strictly row-independent and
    Pallas clips the output write to M, so garbage never leaks — keep that
    invariant if cross-row ops (e.g. layernorm) are ever added.
    """
    o_ref = refs[-1]
    wb = refs[:-1]
    h = x_ref[...]
    for i in range(num_layers):
        w = wb[2 * i][...]
        b = wb[2 * i + 1][...]                       # (1, N) broadcasts over rows
        h = jnp.dot(h, w, preferred_element_type=jnp.float32) + b
        if i < num_layers - 1:
            h = jnp.maximum(h, 0.0)                  # f32 epilogue (v5e VPU has no bf16)
    o_ref[...] = h.astype(o_ref.dtype)


def _pick_row_tile(m):
    """Big tiles for bandwidth, but >=2 grid steps so v7x's 2 TCs both get work."""
    if m <= SUBLANE:
        return SUBLANE
    two_way = _round_up(-(-m // 2), SUBLANE)         # ceil(m/2) rounded to sublane
    return min(PREFERRED_TM, two_way)


def _vmem_limit_bytes(tm, dims, itemsize):
    """Derive the VMEM budget from the real footprint, clamp to physical VMEM."""
    n_layers = len(dims) - 1
    x_tile = tm * dims[0] * itemsize
    o_tile = tm * dims[-1] * itemsize
    consts = sum(dims[i] * dims[i + 1] + dims[i + 1] for i in range(n_layers)) * itemsize
    act = 2 * tm * max(dims) * 4                     # widest f32 intermediate (+slack)
    need = 2 * (x_tile + o_tile) + consts + act      # x/out double-buffered
    phys = 64 * 1024 * 1024                          # conservative default: v7x per-TC
    try:
        info_bytes = int(pltpu.get_tpu_info().vmem_capacity_bytes)
        if info_bytes >= 32 * 1024 * 1024:
            phys = info_bytes
    except Exception:
        pass                                         # keep the conservative default
    return int(min(max(2 * need, 16 * 1024 * 1024), (phys * 3) // 4))


def _const_block_spec(shape, single_buffer):
    """Full-array block with a constant index_map (grid-invariant operand)."""
    index_map = lambda i: (0,) * len(shape)
    if single_buffer:
        # Constant index_map => double-buffering is pure VMEM waste; keep 1 copy.
        return pl.BlockSpec(shape, index_map, pipeline_mode=pl.Buffered(1))
    return pl.BlockSpec(shape, index_map)


def mlp_pallas(x, weights, biases):
    """x: (M, input_dim); weights[i]: (K_i, N_i); biases[i]: (N_i,) -> (M, output_dim)."""
    num_layers = len(weights)
    M, in_dim = x.shape
    dims = [in_dim] + [w.shape[1] for w in weights]

    tm = _pick_row_tile(M)
    grid = (pl.cdiv(M, tm),)
    vmem_limit = _vmem_limit_bytes(tm, dims, x.dtype.itemsize)
    biases2d = [b.reshape(1, -1) for b in biases]    # metadata-only reshape

    def run(single_buffer_consts):
        in_specs = [pl.BlockSpec((tm, in_dim), lambda i: (i, 0))]
        operands = [x]
        for li in range(num_layers):
            k_d, n_d = dims[li], dims[li + 1]
            in_specs.append(_const_block_spec((k_d, n_d), single_buffer_consts))
            in_specs.append(_const_block_spec((1, n_d), single_buffer_consts))
            operands.append(weights[li])
            operands.append(biases2d[li])
        return pl.pallas_call(
            functools.partial(_mlp_kernel, num_layers),
            out_shape=jax.ShapeDtypeStruct((M, dims[-1]), x.dtype),
            grid=grid,
            in_specs=in_specs,
            out_specs=pl.BlockSpec((tm, dims[-1]), lambda i: (i, 0)),
            compiler_params=pltpu.CompilerParams(
                dimension_semantics=("parallel",),
                vmem_limit_bytes=vmem_limit,
            ),
        )(*operands)

    try:
        return run(single_buffer_consts=True)
    except Exception:
        # Fallback for JAX versions without pl.Buffered support on pallas_call
        # inputs; only costs one extra (small) resident copy of the weights.
        return run(single_buffer_consts=False)


def mlp_forward(x, weights, biases):
    """Apply the fused MLP over arbitrary leading dims (like the PyTorch module)."""
    lead = x.shape[:-1]
    y = mlp_pallas(x.reshape(-1, x.shape[-1]), weights, biases)
    return y.reshape(*lead, y.shape[-1])


if __name__ == "__main__":
    # Shapes consistent with DETR's bbox-head MLP(hidden_dim, hidden_dim, 4, 3)
    # at small scale; seq=9 deliberately exercises the ragged edge row-block
    # (M=18 rows, tm=16, grid=2, last block partially out of bounds).
    batch, seq, input_dim = 2, 9, 32
    hidden_dim, output_dim, num_layers = 32, 4, 3

    key = jax.random.PRNGKey(0)
    keys = jax.random.split(key, 1 + num_layers)
    k_x, k_w = keys[0], keys[1:]

    x = jax.random.normal(k_x, (batch, seq, input_dim), dtype=jnp.float32)

    dims_in = [input_dim] + [hidden_dim] * (num_layers - 1)
    dims_out = [hidden_dim] * (num_layers - 1) + [output_dim]
    weights, biases = [], []
    for i, (n, k) in enumerate(zip(dims_in, dims_out)):
        weights.append(0.1 * jax.random.normal(k_w[i], (n, k), dtype=jnp.float32))
        biases.append(jnp.full((k,), 0.01 * (i + 1), dtype=jnp.float32))

    out = mlp_forward(x, weights, biases)
    jax.block_until_ready(out)

    # Pure-JAX reference (same semantics as the PyTorch MLP.forward).
    h = x
    for i, (w, b) in enumerate(zip(weights, biases)):
        h = h @ w + b
        if i < num_layers - 1:
            h = jax.nn.relu(h)
    ref = h

    assert out.shape == (batch, seq, output_dim)
    assert jnp.allclose(out, ref, rtol=1e-5, atol=1e-5)
    print("KERNEL_OK")
</pallas_src>

<mosaic_0001>
module attributes {stable_mosaic.version = 11 : i64} {
  func.func @_mlp_kernel(%arg0: i32, %arg1: memref<16x32xf32, #tpu.memory_space<vmem>>, %arg2: memref<32x32xf32, #tpu.memory_space<vmem>>, %arg3: memref<1x32xf32, #tpu.memory_space<vmem>>, %arg4: memref<32x32xf32, #tpu.memory_space<vmem>>, %arg5: memref<1x32xf32, #tpu.memory_space<vmem>>, %arg6: memref<32x4xf32, #tpu.memory_space<vmem>>, %arg7: memref<1x4xf32, #tpu.memory_space<vmem>>, %arg8: memref<16x4xf32, #tpu.memory_space<vmem>>) attributes {dimension_semantics = [#tpu.dimension_semantics<parallel>], iteration_bounds = array<i64: 2>, scalar_prefetch = 0 : i64, scratch_operands = 0 : i64, tpu.core_type = #tpu.core_type<tc>, window_params = [{transform_indices = @transform_0, window_bounds = array<i64: 16, 32>}, {pipeline_mode = #tpu.pipeline_mode<synchronous>, transform_indices = @transform_1, window_bounds = array<i64: 32, 32>}, {pipeline_mode = #tpu.pipeline_mode<synchronous>, transform_indices = @transform_2, window_bounds = array<i64: 1, 32>}, {pipeline_mode = #tpu.pipeline_mode<synchronous>, transform_indices = @transform_3, window_bounds = array<i64: 32, 32>}, {pipeline_mode = #tpu.pipeline_mode<synchronous>, transform_indices = @transform_4, window_bounds = array<i64: 1, 32>}, {pipeline_mode = #tpu.pipeline_mode<synchronous>, transform_indices = @transform_5, window_bounds = array<i64: 32, 4>}, {pipeline_mode = #tpu.pipeline_mode<synchronous>, transform_indices = @transform_6, window_bounds = array<i64: 1, 4>}, {transform_indices = @transform_7, window_bounds = array<i64: 16, 4>}]} {
    %c0 = arith.constant 0 : index
    %c0_0 = arith.constant 0 : index
    %0 = vector.load %arg1[%c0, %c0_0] : memref<16x32xf32, #tpu.memory_space<vmem>>, vector<16x32xf32>
    %c0_1 = arith.constant 0 : index
    %c0_2 = arith.constant 0 : index
    %1 = vector.load %arg2[%c0_1, %c0_2] : memref<32x32xf32, #tpu.memory_space<vmem>>, vector<32x32xf32>
    %c0_3 = arith.constant 0 : index
    %c0_4 = arith.constant 0 : index
    %2 = vector.load %arg3[%c0_3, %c0_4] : memref<1x32xf32, #tpu.memory_space<vmem>>, vector<1x32xf32>
    %cst = arith.constant dense<0.000000e+00> : vector<16x32xf32>
    %3 = tpu.matmul %0, %1, %cst {dimension_numbers = #tpu.dot_dimension_numbers<[1], [0], [0], [1], [0, 0, 1, 1], [], []>} : vector<16x32xf32>, vector<32x32xf32>, vector<16x32xf32> -> vector<16x32xf32>
    %4 = vector.broadcast %2 : vector<1x32xf32> to vector<16x32xf32>
    %5 = arith.addf %3, %4 : vector<16x32xf32>
    %cst_5 = arith.constant 0.000000e+00 : f32
    %6 = vector.broadcast %cst_5 : f32 to vector<16x32xf32>
    %7 = arith.maximumf %5, %6 : vector<16x32xf32>
    %c0_6 = arith.constant 0 : index
    %c0_7 = arith.constant 0 : index
    %8 = vector.load %arg4[%c0_6, %c0_7] : memref<32x32xf32, #tpu.memory_space<vmem>>, vector<32x32xf32>
    %c0_8 = arith.constant 0 : index
    %c0_9 = arith.constant 0 : index
    %9 = vector.load %arg5[%c0_8, %c0_9] : memref<1x32xf32, #tpu.memory_space<vmem>>, vector<1x32xf32>
    %cst_10 = arith.constant dense<0.000000e+00> : vector<16x32xf32>
    %10 = tpu.matmul %7, %8, %cst_10 {dimension_numbers = #tpu.dot_dimension_numbers<[1], [0], [0], [1], [0, 0, 1, 1], [], []>} : vector<16x32xf32>, vector<32x32xf32>, vector<16x32xf32> -> vector<16x32xf32>
    %11 = vector.broadcast %9 : vector<1x32xf32> to vector<16x32xf32>
    %12 = arith.addf %10, %11 : vector<16x32xf32>
    %cst_11 = arith.constant 0.000000e+00 : f32
    %13 = vector.broadcast %cst_11 : f32 to vector<16x32xf32>
    %14 = arith.maximumf %12, %13 : vector<16x32xf32>
    %c0_12 = arith.constant 0 : index
    %c0_13 = arith.constant 0 : index
    %15 = vector.load %arg6[%c0_12, %c0_13] : memref<32x4xf32, #tpu.memory_space<vmem>>, vector<32x4xf32>
    %c0_14 = arith.constant 0 : index
    %c0_15 = arith.constant 0 : index
    %16 = vector.load %arg7[%c0_14, %c0_15] : memref<1x4xf32, #tpu.memory_space<vmem>>, vector<1x4xf32>
    %cst_16 = arith.constant dense<0.000000e+00> : vector<16x4xf32>
    %17 = tpu.matmul %14, %15, %cst_16 {dimension_numbers = #tpu.dot_dimension_numbers<[1], [0], [0], [1], [0, 0, 1, 1], [], []>} : vector<16x32xf32>, vector<32x4xf32>, vector<16x4xf32> -> vector<16x4xf32>
    %18 = vector.broadcast %16 : vector<1x4xf32> to vector<16x4xf32>
    %19 = arith.addf %17, %18 : vector<16x4xf32>
    %c0_17 = arith.constant 0 : index
    %c0_18 = arith.constant 0 : index
    %20 = vector.load %arg8[%c0_17, %c0_18] : memref<16x4xf32, #tpu.memory_space<vmem>>, vector<16x4xf32>
    tpu.vector_store %arg8[%c0_17, %c0_18], %19 {strides = array<i32>} : memref<16x4xf32, #tpu.memory_space<vmem>>, vector<16x4xf32>,
    return
  }
  func.func @transform_0(%arg0: i32) -> (i32, i32) {
    %c0_i32 = arith.constant 0 : i32
    %c0_i32_0 = arith.constant 0 : i32
    return %arg0, %c0_i32 : i32, i32
  }
  func.func @transform_1(%arg0: i32) -> (i32, i32) {
    %c0_i32 = arith.constant 0 : i32
    %c0_i32_0 = arith.constant 0 : i32
    %c0_i32_1 = arith.constant 0 : i32
    return %c0_i32, %c0_i32_0 : i32, i32
  }
  func.func @transform_2(%arg0: i32) -> (i32, i32) {
    %c0_i32 = arith.constant 0 : i32
    %c0_i32_0 = arith.constant 0 : i32
    %c0_i32_1 = arith.constant 0 : i32
    return %c0_i32, %c0_i32_0 : i32, i32
  }
  func.func @transform_3(%arg0: i32) -> (i32, i32) {
    %c0_i32 = arith.constant 0 : i32
    %c0_i32_0 = arith.constant 0 : i32
    %c0_i32_1 = arith.constant 0 : i32
    return %c0_i32, %c0_i32_0 : i32, i32
  }
  func.func @transform_4(%arg0: i32) -> (i32, i32) {
    %c0_i32 = arith.constant 0 : i32
    %c0_i32_0 = arith.constant 0 : i32
    %c0_i32_1 = arith.constant 0 : i32
    return %c0_i32, %c0_i32_0 : i32, i32
  }
  func.func @transform_5(%arg0: i32) -> (i32, i32) {
    %c0_i32 = arith.constant 0 : i32
    %c0_i32_0 = arith.constant 0 : i32
    %c0_i32_1 = arith.constant 0 : i32
    return %c0_i32, %c0_i32_0 : i32, i32
  }
  func.func @transform_6(%arg0: i32) -> (i32, i32) {
    %c0_i32 = arith.constant 0 : i32
    %c0_i32_0 = arith.constant 0 : i32
    %c0_i32_1 = arith.constant 0 : i32
    return %c0_i32, %c0_i32_0 : i32, i32
  }
  func.func @transform_7(%arg0: i32) -> (i32, i32) {
    %c0_i32 = arith.constant 0 : i32
    %c0_i32_0 = arith.constant 0 : i32
    return %arg0, %c0_i32 : i32, i32
  }
}

module attributes {stable_mosaic.version = 11 : i64} {
  func.func @_mlp_kernel(%arg0: i32, %arg1: memref<16x32xf32, #tpu.memory_space<vmem>>, %arg2: memref<32x32xf32, #tpu.memory_space<vmem>>, %arg3: memref<1x32xf32, #tpu.memory_space<vmem>>, %arg4: memref<32x32xf32, #tpu.memory_space<vmem>>, %arg5: memref<1x32xf32, #tpu.memory_space<vmem>>, %arg6: memref<32x4xf32, #tpu.memory_space<vmem>>, %arg7: memref<1x4xf32, #tpu.memory_space<vmem>>, %arg8: memref<16x4xf32, #tpu.memory_space<vmem>>) attributes {dimension_semantics = [#tpu.dimension_semantics<parallel>], iteration_bounds = array<i64: 2>, scalar_prefetch = 0 : i64, scratch_operands = 0 : i64, tpu.core_type = #tpu.core_type<tc>, window_params = [{transform_indices = @transform_0, window_bounds = array<i64: 16, 32>}, {pipeline_mode = #tpu.pipeline_mode<synchronous>, transform_indices = @transform_1, window_bounds = array<i64: 32, 32>}, {pipeline_mode = #tpu.pipeline_mode<synchronous>, transform_indices = @transform_2, window_bounds = array<i64: 1, 32>}, {pipeline_mode = #tpu.pipeline_mode<synchronous>, transform_indices = @transform_3, window_bounds = array<i64: 32, 32>}, {pipeline_mode = #tpu.pipeline_mode<synchronous>, transform_indices = @transform_4, window_bounds = array<i64: 1, 32>}, {pipeline_mode = #tpu.pipeline_mode<synchronous>, transform_indices = @transform_5, window_bounds = array<i64: 32, 4>}, {pipeline_mode = #tpu.pipeline_mode<synchronous>, transform_indices = @transform_6, window_bounds = array<i64: 1, 4>}, {transform_indices = @transform_7, window_bounds = array<i64: 16, 4>}]} {
    %c0 = arith.constant 0 : index
    %c0_0 = arith.constant 0 : index
    %0 = vector.load %arg1[%c0, %c0_0] : memref<16x32xf32, #tpu.memory_space<vmem>>, vector<16x32xf32>
    %c0_1 = arith.constant 0 : index
    %c0_2 = arith.constant 0 : index
    %1 = vector.load %arg2[%c0_1, %c0_2] : memref<32x32xf32, #tpu.memory_space<vmem>>, vector<32x32xf32>
    %c0_3 = arith.constant 0 : index
    %c0_4 = arith.constant 0 : index
    %2 = vector.load %arg3[%c0_3, %c0_4] : memref<1x32xf32, #tpu.memory_space<vmem>>, vector<1x32xf32>
    %cst = arith.constant dense<0.000000e+00> : vector<16x32xf32>
    %3 = tpu.matmul %0, %1, %cst {dimension_numbers = #tpu.dot_dimension_numbers<[1], [0], [0], [1], [0, 0, 1, 1], [], []>} : vector<16x32xf32>, vector<32x32xf32>, vector<16x32xf32> -> vector<16x32xf32>
    %4 = vector.broadcast %2 : vector<1x32xf32> to vector<16x32xf32>
    %5 = arith.addf %3, %4 : vector<16x32xf32>
    %cst_5 = arith.constant 0.000000e+00 : f32
    %6 = vector.broadcast %cst_5 : f32 to vector<16x32xf32>
    %7 = arith.maximumf %5, %6 : vector<16x32xf32>
    %c0_6 = arith.constant 0 : index
    %c0_7 = arith.constant 0 : index
    %8 = vector.load %arg4[%c0_6, %c0_7] : memref<32x32xf32, #tpu.memory_space<vmem>>, vector<32x32xf32>
    %c0_8 = arith.constant 0 : index
    %c0_9 = arith.constant 0 : index
    %9 = vector.load %arg5[%c0_8, %c0_9] : memref<1x32xf32, #tpu.memory_space<vmem>>, vector<1x32xf32>
    %cst_10 = arith.constant dense<0.000000e+00> : vector<16x32xf32>
    %10 = tpu.matmul %7, %8, %cst_10 {dimension_numbers = #tpu.dot_dimension_numbers<[1], [0], [0], [1], [0, 0, 1, 1], [], []>} : vector<16x32xf32>, vector<32x32xf32>, vector<16x32xf32> -> vector<16x32xf32>
    %11 = vector.broadcast %9 : vector<1x32xf32> to vector<16x32xf32>
    %12 = arith.addf %10, %11 : vector<16x32xf32>
    %cst_11 = arith.constant 0.000000e+00 : f32
    %13 = vector.broadcast %cst_11 : f32 to vector<16x32xf32>
    %14 = arith.maximumf %12, %13 : vector<16x32xf32>
    %c0_12 = arith.constant 0 : index
    %c0_13 = arith.constant 0 : index
    %15 = vector.load %arg6[%c0_12, %c0_13] : memref<32x4xf32, #tpu.memory_space<vmem>>, vector<32x4xf32>
    %c0_14 = arith.constant 0 : index
    %c0_15 = arith.constant 0 : index
    %16 = vector.load %arg7[%c0_14, %c0_15] : memref<1x4xf32, #tpu.memory_space<vmem>>, vector<1x4xf32>
    %cst_16 = arith.constant dense<0.000000e+00> : vector<16x4xf32>
    %17 = tpu.matmul %14, %15, %cst_16 {dimension_numbers = #tpu.dot_dimension_numbers<[1], [0], [0], [1], [0, 0, 1, 1], [], []>} : vector<16x32xf32>, vector<32x4xf32>, vector<16x4xf32> -> vector<16x4xf32>
    %18 = vector.broadcast %16 : vector<1x4xf32> to vector<16x4xf32>
    %19 = arith.addf %17, %18 : vector<16x4xf32>
    %c0_17 = arith.constant 0 : index
    %c0_18 = arith.constant 0 : index
    %20 = vector.load %arg8[%c0_17, %c0_18] : memref<16x4xf32, #tpu.memory_space<vmem>>, vector<16x4xf32>
    tpu.vector_store %arg8[%c0_17, %c0_18], %19 {strides = array<i32>} : memref<16x4xf32, #tpu.memory_space<vmem>>, vector<16x4xf32>,
    return
  }
  func.func @transform_0(%arg0: i32) -> (i32, i32) {
    %c0_i32 = arith.constant 0 : i32
    %c0_i32_0 = arith.constant 0 : i32
    return %arg0, %c0_i32 : i32, i32
  }
  func.func @transform_1(%arg0: i32) -> (i32, i32) {
    %c0_i32 = arith.constant 0 : i32
    %c0_i32_0 = arith.constant 0 : i32
    %c0_i32_1 = arith.constant 0 : i32
    return %c0_i32, %c0_i32_0 : i32, i32
  }
  func.func @transform_2(%arg0: i32) -> (i32, i32) {
    %c0_i32 = arith.constant 0 : i32
    %c0_i32_0 = arith.constant 0 : i32
    %c0_i32_1 = arith.constant 0 : i32
    return %c0_i32, %c0_i32_0 : i32, i32
  }
  func.func @transform_3(%arg0: i32) -> (i32, i32) {
    %c0_i32 = arith.constant 0 : i32
    %c0_i32_0 = arith.constant 0 : i32
    %c0_i32_1 = arith.constant 0 : i32
    return %c0_i32, %c0_i32_0 : i32, i32
  }
  func.func @transform_4(%arg0: i32) -> (i32, i32) {
    %c0_i32 = arith.constant 0 : i32
    %c0_i32_0 = arith.constant 0 : i32
    %c0_i32_1 = arith.constant 0 : i32
    return %c0_i32, %c0_i32_0 : i32, i32
  }
  func.func @transform_5(%arg0: i32) -> (i32, i32) {
    %c0_i32 = arith.constant 0 : i32
    %c0_i32_0 = arith.constant 0 : i32
    %c0_i32_1 = arith.constant 0 : i32
    return %c0_i32, %c0_i32_0 : i32, i32
  }
  func.func @transform_6(%arg0: i32) -> (i32, i32) {
    %c0_i32 = arith.constant 0 : i32
    %c0_i32_0 = arith.constant 0 : i32
    %c0_i32_1 = arith.constant 0 : i32
    return %c0_i32, %c0_i32_0 : i32, i32
  }
  func.func @transform_7(%arg0: i32) -> (i32, i32) {
    %c0_i32 = arith.constant 0 : i32
    %c0_i32_0 = arith.constant 0 : i32
    return %arg0, %c0_i32 : i32, i32
  }
}

</mosaic_0001>

<llo_original>
// kernel: tpu_custom_call.1
$region0: #{tpu_custom_call.1}
  #allocation0 [shape = 'u32[]', space=smem, size = 0x4, offset = 0x4, fixed_abs, tag = 'smem constant byte address 0x4 - core index']
  #allocation1 [shape = 'u32[144,128]{1,0:T(1,128)}', space=vmem, size = 0x12000, scoped, tag = 'internal scratch']
  %s0 = inlined_call_operand.hbm [shape: f32[18,32], index: 0, kind: input, shape index: {}]
  %s1 = inlined_call_operand.vmem [shape: f32[32,32], index: 1, kind: input, shape index: {}]
  %s2 = inlined_call_operand.vmem [shape: f32[1,32], index: 2, kind: input, shape index: {}]
  %s3 = inlined_call_operand.hbm [shape: f32[32,32], index: 3, kind: input, shape index: {}]
  %s4 = inlined_call_operand.vmem [shape: f32[1,32], index: 4, kind: input, shape index: {}]
  %s5 = inlined_call_operand.vmem [shape: f32[32,4], index: 5, kind: input, shape index: {}]
  %s6 = inlined_call_operand.vmem [shape: f32[1,4], index: 6, kind: input, shape index: {}]
  %s7 = inlined_call_operand.vmem [shape: f32[18,4], index: 7, kind: output, shape index: {}]
  %s8 = sld [smem:[#allocation0]]
  $region117: #{tpu_custom_call.1} parent=0
    _
  %s10 = ssub.s32 1, %s8
  %s11 = scalar_select 0, %s10, %s8
  $region1: #{tpu_custom_call.1} parent=0
    #allocation2 [shape = 'u8[16384]{0}', space=vmem, size = 0x4000, scoped, tag = 'input window, operand 0']
    #allocation3 [shape = 's32[2]{0}', space=sflag, size = 0x8, scoped, tag = 'scoped memory for tpu_custom_call.1']
    #allocation4 [shape = 'u8[16384]{0}', space=vmem, size = 0x4000, scoped, tag = 'input window, operand 3, single buffered']
    #allocation5 [shape = 's32[1]{0}', space=sflag, size = 0x4, scoped, tag = 'scoped memory for tpu_custom_call.1']
    #allocation6 [shape = 'u8[16384]{0}', space=vmem, size = 0x4000, scoped, tag = 'output window, operand 0']
    %12 = vsyncpa [#allocation3], 0
    %s13 = scalar_lea.sflag [#allocation3], 1
    %14 = vsyncpa %s13, 0
    %15 = vsyncpa [#allocation5], 0
    loop: start=0, step=1, limit=4
    $region2: #{tpu_custom_call.1} parent=1 // loop_pre_header
      _
    $region3: #{tpu_custom_call.1} parent=1 // loop_header
      %s17 = sphi 0, %s21
      %p18 = scmp.ge.s32.totalorder %s17, 4
      %s27 = sphi 0, %s29
      %s30 = sphi 0, %s27
      %s31 = sphi 0, %s30
      %s47 = sphi 0, %s31
      %s51 = sphi 0, %s51
      %s53 = sphi 0, %s51
      %s54 = sphi 0, %s53
      %s68 = sphi 0, %s54
      %s72 = sphi 0, %s72
      %s74 = sphi 0, %s72
      %s75 = sphi 0, %s74
      %s89 = sphi 0, %s75
      %s93 = sphi 0, %s93
      %s95 = sphi 0, %s93
      %s96 = sphi 0, %s95
      %s110 = sphi 0, %s96
      %s114 = sphi 0, %s114
      %s116 = sphi 0, %s114
      %s117 = sphi 0, %s116
      %s131 = sphi 0, %s117
      %s135 = sphi 0, %s135
      %s137 = sphi 0, %s135
      %s138 = sphi 0, %s137
      %s152 = sphi 0, %s138
      %s156 = sphi 0, %s156
      %s158 = sphi 0, %s156
      %s159 = sphi 0, %s158
      %s173 = sphi 0, %s159
      %s179 = sphi 0, %s181
      %s182 = sphi 0, %s179
      %s183 = sphi 0, %s182
      %s199 = sphi 0, %s183
    $region4: #{tpu_custom_call.1} parent=1 // loop_header_branch
      %20 = sbr.rel (%p18) target = $region8
    $region5: #{tpu_custom_call.1} parent=1 // loop_body
      %s22 = ssub.s32 %s17, 1
      %s23 = ssub.s32 %s17, 2
      %s24 = sadd.s32 %s17, 1
      %s25 = ssub.s32 %s17, %s24
      %p26 = scmp.eq.s32.totalorder %s25, 0
      %s28 = sadd.s32 %s27, 1
      %s29 = scalar_select %p26, %s27, %s28
      %p32 = pneg %p26
      %p33 = scmp.eq.s32.totalorder %s17, 1
      %p34 = por %p32, %p33
      %p35 = scmp.ne.s32.totalorder %s27, %s30
      %p36 = scmp.eq.s32.totalorder %s17, 0
      %p37 = por %p35, %p36
      %p38 = scmp.ne.s32.totalorder %s27, %s30
      %p39 = scmp.eq.s32.totalorder %s22, 1
      %p40 = por %p38, %p39
      %p41 = scmp.ne.s32.totalorder %s30, %s31
      %p42 = scmp.eq.s32.totalorder %s22, 0
      %p43 = por %p41, %p42
      %p44 = scmp.ne.s32.totalorder %s30, %s31
      %p45 = scmp.eq.s32.totalorder %s23, 1
      %p46 = por %p44, %p45
      %p48 = scmp.ne.s32.totalorder %s31, %s47
      %p49 = scmp.eq.s32.totalorder %s23, 0
      %p50 = por %p48, %p49
      %s52 = sadd.s32 %s51, 1
      %p55 = scmp.eq.s32.totalorder %s17, 1
      %p56 = scmp.ne.s32.totalorder %s51, %s53
      %p57 = scmp.eq.s32.totalorder %s17, 0
      %p58 = por %p56, %p57
      %p59 = scmp.ne.s32.totalorder %s51, %s53
      %p60 = scmp.eq.s32.totalorder %s22, 1
      %p61 = por %p59, %p60
      %p62 = scmp.ne.s32.totalorder %s53, %s54
      %p63 = scmp.eq.s32.totalorder %s22, 0
      %p64 = por %p62, %p63
      %p65 = scmp.ne.s32.totalorder %s53, %s54
      %p66 = scmp.eq.s32.totalorder %s23, 1
      %p67 = por %p65, %p66
      %p69 = scmp.ne.s32.totalorder %s54, %s68
      %p70 = scmp.eq.s32.totalorder %s23, 0
      %p71 = por %p69, %p70
      %s73 = sadd.s32 %s72, 1
      %p76 = scmp.eq.s32.totalorder %s17, 1
      %p77 = scmp.ne.s32.totalorder %s72, %s74
      %p78 = scmp.eq.s32.totalorder %s17, 0
      %p79 = por %p77, %p78
      %p80 = scmp.ne.s32.totalorder %s72, %s74
      %p81 = scmp.eq.s32.totalorder %s22, 1
      %p82 = por %p80, %p81
      %p83 = scmp.ne.s32.totalorder %s74, %s75
      %p84 = scmp.eq.s32.totalorder %s22, 0
      %p85 = por %p83, %p84
      %p86 = scmp.ne.s32.totalorder %s74, %s75
      %p87 = scmp.eq.s32.totalorder %s23, 1
      %p88 = por %p86, %p87
      %p90 = scmp.ne.s32.totalorder %s75, %s89
      %p91 = scmp.eq.s32.totalorder %s23, 0
      %p92 = por %p90, %p91
      %s94 = sadd.s32 %s93, 1
      %p97 = scmp.eq.s32.totalorder %s17, 1
      %p98 = scmp.ne.s32.totalorder %s93, %s95
      %p99 = scmp.eq.s32.totalorder %s17, 0
      %p100 = por %p98, %p99
      %p101 = scmp.ne.s32.totalorder %s93, %s95
      %p102 = scmp.eq.s32.totalorder %s22, 1
      %p103 = por %p101, %p102
      %p104 = scmp.ne.s32.totalorder %s95, %s96
      %p105 = scmp.eq.s32.totalorder %s22, 0
      %p106 = por %p104, %p105
      %p107 = scmp.ne.s32.totalorder %s95, %s96
      %p108 = scmp.eq.s32.totalorder %s23, 1
      %p109 = por %p107, %p108
      %p111 = scmp.ne.s32.totalorder %s96, %s110
      %p112 = scmp.eq.s32.totalorder %s23, 0
      %p113 = por %p111, %p112
      %s115 = sadd.s32 %s114, 1
      %p118 = scmp.eq.s32.totalorder %s17, 1
      %p119 = scmp.ne.s32.totalorder %s114, %s116
      %p120 = scmp.eq.s32.totalorder %s17, 0
      %p121 = por %p119, %p120
      %p122 = scmp.ne.s32.totalorder %s114, %s116
      %p123 = scmp.eq.s32.totalorder %s22, 1
      %p124 = por %p122, %p123
      %p125 = scmp.ne.s32.totalorder %s116, %s117
      %p126 = scmp.eq.s32.totalorder %s22, 0
      %p127 = por %p125, %p126
      %p128 = scmp.ne.s32.totalorder %s116, %s117
      %p129 = scmp.eq.s32.totalorder %s23, 1
      %p130 = por %p128, %p129
      %p132 = scmp.ne.s32.totalorder %s117, %s131
      %p133 = scmp.eq.s32.totalorder %s23, 0
      %p134 = por %p132, %p133
      %s136 = sadd.s32 %s135, 1
      %p139 = scmp.eq.s32.totalorder %s17, 1
      %p140 = scmp.ne.s32.totalorder %s135, %s137
      %p141 = scmp.eq.s32.totalorder %s17, 0
      %p142 = por %p140, %p141
      %p143 = scmp.ne.s32.totalorder %s135, %s137
      %p144 = scmp.eq.s32.totalorder %s22, 1
      %p145 = por %p143, %p144
      %p146 = scmp.ne.s32.totalorder %s137, %s138
      %p147 = scmp.eq.s32.totalorder %s22, 0
      %p148 = por %p146, %p147
      %p149 = scmp.ne.s32.totalorder %s137, %s138
      %p150 = scmp.eq.s32.totalorder %s23, 1
      %p151 = por %p149, %p150
      %p153 = scmp.ne.s32.totalorder %s138, %s152
      %p154 = scmp.eq.s32.totalorder %s23, 0
      %p155 = por %p153, %p154
      %s157 = sadd.s32 %s156, 1
      %p160 = scmp.eq.s32.totalorder %s17, 1
      %p161 = scmp.ne.s32.totalorder %s156, %s158
      %p162 = scmp.eq.s32.totalorder %s17, 0
      %p163 = por %p161, %p162
      %p164 = scmp.ne.s32.totalorder %s156, %s158
      %p165 = scmp.eq.s32.totalorder %s22, 1
      %p166 = por %p164, %p165
      %p167 = scmp.ne.s32.totalorder %s158, %s159
      %p168 = scmp.eq.s32.totalorder %s22, 0
      %p169 = por %p167, %p168
      %p170 = scmp.ne.s32.totalorder %s158, %s159
      %p171 = scmp.eq.s32.totalorder %s23, 1
      %p172 = por %p170, %p171
      %p174 = scmp.ne.s32.totalorder %s159, %s173
      %p175 = scmp.eq.s32.totalorder %s23, 0
      %p176 = por %p174, %p175
      %s177 = ssub.s32 %s17, %s24
      %p178 = scmp.eq.s32.totalorder %s177, 0
      %s180 = sadd.s32 %s179, 1
      %s181 = scalar_select %p178, %s179, %s180
      %p184 = pneg %p178
      %p185 = scmp.eq.s32.totalorder %s17, 1
      %p186 = por %p184, %p185
      %p187 = scmp.ne.s32.totalorder %s179, %s182
      %p188 = scmp.eq.s32.totalorder %s17, 0
      %p189 = por %p187, %p188
      %p190 = scmp.ne.s32.totalorder %s179, %s182
      %p191 = scmp.eq.s32.totalorder %s22, 1
      %p192 = por %p190, %p191
      %p193 = scmp.ne.s32.totalorder %s182, %s183
      %p194 = scmp.eq.s32.totalorder %s22, 0
      %p195 = por %p193, %p194
      %p196 = scmp.ne.s32.totalorder %s182, %s183
      %p197 = scmp.eq.s32.totalorder %s23, 1
      %p198 = por %p196, %p197
      %p200 = scmp.ne.s32.totalorder %s183, %s199
      %p201 = scmp.eq.s32.totalorder %s23, 0
      %p202 = por %p200, %p201
      %p203 = scmp.le.s32.totalorder 1, %s17
      %p204 = scmp.lt.s32.totalorder %s17, 3
      %p205 = pnand %p203, %p204
      %p206 = pneg %p205
      // Predicated region
      $region9: #{tpu_custom_call.1} parent=5 // pred_check
        _
      $region10: #{tpu_custom_call.1} parent=5 // pred_check_branch
        %208 = sbr.rel (%p205) target = $region12
      $region11: #{tpu_custom_call.1} parent=5 // pred_region
        %s209 = ssub.s32 %s17, 1
        // Predicated region
        $region13: #{tpu_custom_call.1} parent=11 // pred_check
          %p210 = pneg %p64
        $region14: #{tpu_custom_call.1} parent=11 // pred_check_branch
          %212 = sbr.rel (%p210) target = $region16
        $region15: #{tpu_custom_call.1} parent=11 // pred_region
          _
        $region16: #{tpu_custom_call.1} parent=11 // pred_fallthru
          _
        // Predicated region
        $region17: #{tpu_custom_call.1} parent=11 // pred_check
          %p213 = pneg %p85
        $region18: #{tpu_custom_call.1} parent=11 // pred_check_branch
          %215 = sbr.rel (%p213) target = $region20
        $region19: #{tpu_custom_call.1} parent=11 // pred_region
          _
        $region20: #{tpu_custom_call.1} parent=11 // pred_fallthru
          _
        // Predicated region
        $region21: #{tpu_custom_call.1} parent=11 // pred_check
          %p216 = pneg %p106
        $region22: #{tpu_custom_call.1} parent=11 // pred_check_branch
          %218 = sbr.rel (%p216) target = $region24
        $region23: #{tpu_custom_call.1} parent=11 // pred_region
          %s220 = ssub.s32 512, 512
          %221 = vsyncadd [#allocation5], %s220
          %s222 = sshll.u32 [#allocation4], 4
          %s223 = int_to_ptr.vmem [resolvable:$true] %s222
          %228 = dma.hbm_to_vmem [thread:$0]  %s3, 512, %s223, [#allocation5], 128, 128, 8
        $region24: #{tpu_custom_call.1} parent=11 // pred_fallthru
          _
        // Predicated region
        $region25: #{tpu_custom_call.1} parent=11 // pred_check
          %p229 = pneg %p127
        $region26: #{tpu_custom_call.1} parent=11 // pred_check_branch
          %231 = sbr.rel (%p229) target = $region28
        $region27: #{tpu_custom_call.1} parent=11 // pred_region
          _
        $region28: #{tpu_custom_call.1} parent=11 // pred_fallthru
          _
        // Predicated region
        $region29: #{tpu_custom_call.1} parent=11 // pred_check
          %p232 = pneg %p148
        $region30: #{tpu_custom_call.1} parent=11 // pred_check_branch
          %234 = sbr.rel (%p232) target = $region32
        $region31: #{tpu_custom_call.1} parent=11 // pred_region
          _
        $region32: #{tpu_custom_call.1} parent=11 // pred_fallthru
          _
        // Predicated region
        $region33: #{tpu_custom_call.1} parent=11 // pred_check
          %p235 = pneg %p169
        $region34: #{tpu_custom_call.1} parent=11 // pred_check_branch
          %237 = sbr.rel (%p235) target = $region36
        $region35: #{tpu_custom_call.1} parent=11 // pred_region
          _
        $region36: #{tpu_custom_call.1} parent=11 // pred_fallthru
          _
      $region12: #{tpu_custom_call.1} parent=5 // pred_fallthru
        _
      %p238 = scmp.lt.s32.totalorder %s17, 2
      // Predicated region
      $region37: #{tpu_custom_call.1} parent=5 // pred_check
        %p239 = pneg %p238
      $region38: #{tpu_custom_call.1} parent=5 // pred_check_branch
        %241 = sbr.rel (%p239) target = $region40
      $region39: #{tpu_custom_call.1} parent=5 // pred_region
        // Predicated region
        $region41: #{tpu_custom_call.1} parent=39 // pred_check
          %p242 = pneg %p37
        $region42: #{tpu_custom_call.1} parent=39 // pred_check_branch
          %244 = sbr.rel (%p242) target = $region44
        $region43: #{tpu_custom_call.1} parent=39 // pred_region
          %s245 = sand.u32 %s27, 1
          %s246 = scalar_lea.sflag [#allocation3], %s245
          %s247 = sand.u32 %s27, 1
          %s248 = smul.addr %s247, 16
          %s249 = scalar_lea.vmem [#allocation2], %s248
          %s250 = smul.u32 2, %s17
          %s251 = ssub.s32 3, %s250
          %p252 = scmp.lt.s32.totalorder %s251, 2
          %s253 = scalar_select %p252, %s251, 2
          %s254 = smul.u32 128, %s253
          %s256 = ssub.s32 256, %s254
          %257 = vsyncadd %s246, %s256
          %p258 = scmp.ne.s32.totalorder 0, %s254
          %s259 = smul.addr %s250, 128
          %s260 = scalar_lea.hbm %s0, %s259
          %s261 = smul.u32 8, %s253
          %s262 = sshll.u32 %s249, 4
          %s263 = int_to_ptr.vmem [resolvable:$true] %s262
          %s264 = sshll.u32 %s261, 4
          %268 = dma.hbm_to_vmem [thread:$0]  (%p258), %s260, %s264, %s263, %s246, 128, 128, 8
        $region44: #{tpu_custom_call.1} parent=39 // pred_fallthru
          _
      $region40: #{tpu_custom_call.1} parent=5 // pred_fallthru
        _
      %p269 = scmp.le.s32.totalorder 1, %s17
      %p270 = scmp.lt.s32.totalorder %s17, 3
      %p271 = pnand %p269, %p270
      %p272 = pneg %p271
      // Predicated region
      $region45: #{tpu_custom_call.1} parent=5 // pred_check
        _
      $region46: #{tpu_custom_call.1} parent=5 // pred_check_branch
        %274 = sbr.rel (%p271) target = $region48
      $region47: #{tpu_custom_call.1} parent=5 // pred_region
        %s275 = ssub.s32 %s17, 1
        %s276 = sand.u32 %s30, 1
        %s277 = scalar_lea.sflag [#allocation3], %s276
        %s278 = sand.u32 %s30, 1
        %s279 = smul.addr %s278, 16
        %s280 = scalar_lea.vmem [#allocation2], %s279
        // Predicated region
        $region49: #{tpu_custom_call.1} parent=47 // pred_check
          %p281 = pneg %p43
        $region50: #{tpu_custom_call.1} parent=47 // pred_check_branch
          %283 = sbr.rel (%p281) target = $region52
        $region51: #{tpu_custom_call.1} parent=47 // pred_region
          %284 = dma.done %s277, 256
        $region52: #{tpu_custom_call.1} parent=47 // pred_fallthru
          _
        // Predicated region
        $region53: #{tpu_custom_call.1} parent=47 // pred_check
          %p285 = pneg %p106
        $region54: #{tpu_custom_call.1} parent=47 // pred_check_branch
          %287 = sbr.rel (%p285) target = $region56
        $region55: #{tpu_custom_call.1} parent=47 // pred_region
          %288 = dma.done [#allocation5], 512
        $region56: #{tpu_custom_call.1} parent=47 // pred_fallthru
          _
        %s289 = sand.u32 %s30, 1
        %s290 = scalar_lea.sflag [#allocation3], %s289
        %s291 = sand.u32 %s30, 1
        %s292 = smul.addr %s291, 16
        %s293 = scalar_lea.vmem [#allocation2], %s292
        %p294 = pneg %p43
        %p295 = pneg %p40
        %p296 = pneg %p64
        %p297 = pneg %p61
        %p298 = pneg %p85
        %p299 = pneg %p82
        %p300 = pneg %p106
        %p301 = pneg %p103
        %p302 = pneg %p127
        %p303 = pneg %p124
        %p304 = pneg %p148
        %p305 = pneg %p145
        %p306 = pneg %p169
        %p307 = pneg %p166
        %p308 = pneg %p195
        %p309 = pneg %p192
        %s310 = sand.u32 %s182, 1
        %s311 = sand.u32 %s182, 1
        %s312 = smul.addr %s311, 16
        %s313 = scalar_lea.vmem [#allocation6], %s312
        %s314 = smul.u32 2, %s22
        %s315 = ssub.s32 3, %s314
        %p316 = scmp.lt.s32.totalorder %s315, 2
        %s317 = scalar_select %p316, %s315, 2
        %s318 = smul.u32 128, %s317
        %s319 = smul.u32 2, %s22
        %s320 = ssub.s32 3, %s319
        %p321 = scmp.lt.s32.totalorder %s320, 2
        %s322 = scalar_select %p321, %s320, 2
        %s323 = smul.u32 128, %s322
        %v324 = vld [vmem:[%s280] sm:$0xff]
        %v325 = vld [vmem:[%s280 + $0x8] sm:$0xff]
        %v326 = vld [vmem:[%s1] sm:$0xff]
        %v327 = vld [vmem:[%s1 + $0x8] sm:$0xff]
        %v328 = vld [vmem:[%s1 + $0x10] sm:$0xff]
        %v329 = vld [vmem:[%s1 + $0x18] sm:$0xff]
        %v330 = vld [vmem:[%s2] sm:$0x1]
        %v332 = vlaneseq
        %v333 = vshrl.u32 %v332, 7
        %v334 = vsub.s32 0, %v333
        %v335 = vrot.slane %v330, %v334
        %vm337 = vcmask 261120
        %v339 = vsel %vm337, %v324, 0
        %v342 = vsel %vm337, %v325, 0
        %344 = vmatprep.subr.mxu0 0.0
        %345 = vmatpush1.msra.mxu0 %v326
        %346 = vmatprep.subr.mxu0 0.0
        %347 = vmatpush1.msra.mxu0 %v327
        %348 = vmatprep.subr.mxu0 0.0
        %349 = vmatpush1.msra.mxu0 %v328
        %350 = vmatprep.subr.mxu0 0.0
        %351 = vmatpush1.msra.mxu0 %v329
        %352 = vmatprep.subr.mxu0 0.0
        %353 = vmatpush1.msra.mxu0 0.0
        %354 = vmatprep.subr.mxu0 0.0
        %355 = vmatpush1.msra.mxu0 0.0
        %356 = vmatprep.subr.mxu0 0.0
        %357 = vmatpush1.msra.mxu0 0.0
        %358 = vmatprep.subr.mxu0 0.0
        %359 = vmatpush1.msra.mxu0 0.0
        %360 = vmatprep.subr.mxu0 0.0
        %361 = vmatpush1.msra.mxu0 0.0
        %362 = vmatprep.subr.mxu0 0.0
        %363 = vmatpush1.msra.mxu0 0.0
        %364 = vmatprep.subr.mxu0 0.0
        %365 = vmatpush1.msra.mxu0 0.0
        %366 = vmatprep.subr.mxu0 0.0
        %367 = vmatpush1.msra.mxu0 0.0
        %368 = vmatprep.subr.mxu0 0.0
        %369 = vmatpush1.msra.mxu0 0.0
        %370 = vmatprep.subr.mxu0 0.0
        %371 = vmatpush1.msra.mxu0 0.0
        %372 = vmatprep.subr.mxu0 0.0
        %373 = vmatpush1.msra.mxu0 0.0
        %374 = vmatprep.subr.mxu0 0.0
        %375 = vmatpush1.msra.mxu0 0.0
        %376 = vmatprep.subr.mxu0 0.0
        %377 = vmatpush1.msra.mxu0 0.0
        %378 = vmatprep.subr.mxu0 0.0
        %379 = vmatpush1.msra.mxu0 0.0
        %380 = vmatprep.subr.mxu0 0.0
        %381 = vmatpush1.msra.mxu0 0.0
        %382 = vmatprep.subr.mxu0 0.0
        %383 = vmatpush1.msra.mxu0 0.0
        %384 = vmatprep.subr.mxu0 0.0
        %385 = vmatpush1.msra.mxu0 0.0
        %386 = vmatprep.subr.mxu0 0.0
        %387 = vmatpush1.msra.mxu0 0.0
        %388 = vmatprep.subr.mxu0 0.0
        %389 = vmatpush1.msra.mxu0 0.0
        %390 = vmatprep.subr.mxu0 0.0
        %391 = vmatpush1.msra.mxu0 0.0
        %392 = vmatprep.subr.mxu0 0.0
        %393 = vmatpush1.msra.mxu0 0.0
        %394 = vmatprep.subr.mxu0 0.0
        %395 = vmatpush1.msra.mxu0 0.0
        %396 = vmatprep.subr.mxu0 0.0
        %397 = vmatpush1.msra.mxu0 0.0
        %398 = vmatprep.subr.mxu0 0.0
        %399 = vmatpush1.msra.mxu0 0.0
        %400 = vmatprep.subr.mxu0 0.0
        %401 = vmatpush1.msra.mxu0 0.0
        %402 = vmatprep.subr.mxu0 0.0
        %403 = vmatpush1.msra.mxu0 0.0
        %404 = vmatprep.subr.mxu0 0.0
        %405 = vmatpush1.msra.mxu0 0.0
        %406 = vmatprep.subr.mxu0 0.0
        %407 = vmatpush1.msra.mxu0 0.0
        %408 = vmatprep.mubr.f32.mxu0 0.0
        %409 = vmatmul.mubr.f32.gmra.mrb[0].mxu0 %v339
        %v410 = vpop.f32.mrb[0].mxu0
        %v411 = vadd.f32 %v335, %v410
        %v412 = vpop.f32.mrb[0].mxu0
        %413 = vmatprep.mubr.f32.mxu0 0.0
        %414 = vmatmul.mubr.f32.gmra.mrb[0].mxu0 %v342
        %v415 = vpop.f32.mrb[0].mxu0
        %v416 = vadd.f32 %v335, %v415
        %v417 = vpop.f32.mrb[0].mxu0
        %418 = vdwg.mxu0
        %v419 = vmax.f32 %v411, 0.0
        %v420 = vmax.f32 %v416, 0.0
        %v421 = vld [vmem:[#allocation4] sm:$0xff]
        %v422 = vld [vmem:[#allocation4 + $0x8] sm:$0xff]
        %v423 = vld [vmem:[#allocation4 + $0x10] sm:$0xff]
        %v424 = vld [vmem:[#allocation4 + $0x18] sm:$0xff]
        %v425 = vld [vmem:[%s4] sm:$0x1]
        %v427 = vlaneseq
        %v428 = vshrl.u32 %v427, 7
        %v429 = vsub.s32 0, %v428
        %v430 = vrot.slane %v425, %v429
        %v433 = vsel %vm337, %v419, 0
        %v436 = vsel %vm337, %v420, 0
        %438 = vmatprep.subr.mxu0 0.0
        %439 = vmatpush1.msra.mxu0 %v421
        %440 = vmatprep.subr.mxu0 0.0
        %441 = vmatpush1.msra.mxu0 %v422
        %442 = vmatprep.subr.mxu0 0.0
        %443 = vmatpush1.msra.mxu0 %v423
        %444 = vmatprep.subr.mxu0 0.0
        %445 = vmatpush1.msra.mxu0 %v424
        %446 = vmatprep.subr.mxu0 0.0
        %447 = vmatpush1.msra.mxu0 0.0
        %448 = vmatprep.subr.mxu0 0.0
        %449 = vmatpush1.msra.mxu0 0.0
        %450 = vmatprep.subr.mxu0 0.0
        %451 = vmatpush1.msra.mxu0 0.0
        %452 = vmatprep.subr.mxu0 0.0
        %453 = vmatpush1.msra.mxu0 0.0
        %454 = vmatprep.subr.mxu0 0.0
        %455 = vmatpush1.msra.mxu0 0.0
        %456 = vmatprep.subr.mxu0 0.0
        %457 = vmatpush1.msra.mxu0 0.0
        %458 = vmatprep.subr.mxu0 0.0
        %459 = vmatpush1.msra.mxu0 0.0
        %460 = vmatprep.subr.mxu0 0.0
        %461 = vmatpush1.msra.mxu0 0.0
        %462 = vmatprep.subr.mxu0 0.0
        %463 = vmatpush1.msra.mxu0 0.0
        %464 = vmatprep.subr.mxu0 0.0
        %465 = vmatpush1.msra.mxu0 0.0
        %466 = vmatprep.subr.mxu0 0.0
        %467 = vmatpush1.msra.mxu0 0.0
        %468 = vmatprep.subr.mxu0 0.0
        %469 = vmatpush1.msra.mxu0 0.0
        %470 = vmatprep.subr.mxu0 0.0
        %471 = vmatpush1.msra.mxu0 0.0
        %472 = vmatprep.subr.mxu0 0.0
        %473 = vmatpush1.msra.mxu0 0.0
        %474 = vmatprep.subr.mxu0 0.0
        %475 = vmatpush1.msra.mxu0 0.0
        %476 = vmatprep.subr.mxu0 0.0
        %477 = vmatpush1.msra.mxu0 0.0
        %478 = vmatprep.subr.mxu0 0.0
        %479 = vmatpush1.msra.mxu0 0.0
        %480 = vmatprep.subr.mxu0 0.0
        %481 = vmatpush1.msra.mxu0 0.0
        %482 = vmatprep.subr.mxu0 0.0
        %483 = vmatpush1.msra.mxu0 0.0
        %484 = vmatprep.subr.mxu0 0.0
        %485 = vmatpush1.msra.mxu0 0.0
        %486 = vmatprep.subr.mxu0 0.0
        %487 = vmatpush1.msra.mxu0 0.0
        %488 = vmatprep.subr.mxu0 0.0
        %489 = vmatpush1.msra.mxu0 0.0
        %490 = vmatprep.subr.mxu0 0.0
        %491 = vmatpush1.msra.mxu0 0.0
        %492 = vmatprep.subr.mxu0 0.0
        %493 = vmatpush1.msra.mxu0 0.0
        %494 = vmatprep.subr.mxu0 0.0
        %495 = vmatpush1.msra.mxu0 0.0
        %496 = vmatprep.subr.mxu0 0.0
        %497 = vmatpush1.msra.mxu0 0.0
        %498 = vmatprep.subr.mxu0 0.0
        %499 = vmatpush1.msra.mxu0 0.0
        %500 = vmatprep.subr.mxu0 0.0
        %501 = vmatpush1.msra.mxu0 0.0
        %502 = vmatprep.mubr.f32.mxu0 0.0
        %503 = vmatmul.mubr.f32.gmra.mrb[0].mxu0 %v433
        %v504 = vpop.f32.mrb[0].mxu0
        %v505 = vadd.f32 %v430, %v504
        %v506 = vpop.f32.mrb[0].mxu0
        %507 = vmatprep.mubr.f32.mxu0 0.0
        %508 = vmatmul.mubr.f32.gmra.mrb[0].mxu0 %v436
        %v509 = vpop.f32.mrb[0].mxu0
        %v510 = vadd.f32 %v430, %v509
        %v511 = vpop.f32.mrb[0].mxu0
        %512 = vdwg.mxu0
        %v513 = vmax.f32 %v505, 0.0
        %v514 = vmax.f32 %v510, 0.0
        %v515 = vld [vmem:[%s5] sm:$0xff]
        %v516 = vld [vmem:[%s5 + $0x8] sm:$0xff]
        %v517 = vld [vmem:[%s5 + $0x10] sm:$0xff]
        %v518 = vld [vmem:[%s5 + $0x18] sm:$0xff]
        %v519 = vld [vmem:[%s6] sm:$0x1]
        %v521 = vlaneseq
        %v522 = vshrl.u32 %v521, 7
        %v523 = vsub.s32 0, %v522
        %v524 = vrot.slane %v519, %v523
        %v527 = vsel %vm337, %v513, 0
        %v530 = vsel %vm337, %v514, 0
        %532 = vmatprep.subr.mxu0 0.0
        %533 = vmatpush1.msra.mxu0 %v515
        %534 = vmatprep.subr.mxu0 0.0
        %535 = vmatpush1.msra.mxu0 %v516
        %536 = vmatprep.subr.mxu0 0.0
        %537 = vmatpush1.msra.mxu0 %v517
        %538 = vmatprep.subr.mxu0 0.0
        %539 = vmatpush1.msra.mxu0 %v518
        %540 = vmatprep.subr.mxu0 0.0
        %541 = vmatpush1.msra.mxu0 0.0
        %542 = vmatprep.subr.mxu0 0.0
        %543 = vmatpush1.msra.mxu0 0.0
        %544 = vmatprep.subr.mxu0 0.0
        %545 = vmatpush1.msra.mxu0 0.0
        %546 = vmatprep.subr.mxu0 0.0
        %547 = vmatpush1.msra.mxu0 0.0
        %548 = vmatprep.subr.mxu0 0.0
        %549 = vmatpush1.msra.mxu0 0.0
        %550 = vmatprep.subr.mxu0 0.0
        %551 = vmatpush1.msra.mxu0 0.0
        %552 = vmatprep.subr.mxu0 0.0
        %553 = vmatpush1.msra.mxu0 0.0
        %554 = vmatprep.subr.mxu0 0.0
        %555 = vmatpush1.msra.mxu0 0.0
        %556 = vmatprep.subr.mxu0 0.0
        %557 = vmatpush1.msra.mxu0 0.0
        %558 = vmatprep.subr.mxu0 0.0
        %559 = vmatpush1.msra.mxu0 0.0
        %560 = vmatprep.subr.mxu0 0.0
        %561 = vmatpush1.msra.mxu0 0.0
        %562 = vmatprep.subr.mxu0 0.0
        %563 = vmatpush1.msra.mxu0 0.0
        %564 = vmatprep.subr.mxu0 0.0
        %565 = vmatpush1.msra.mxu0 0.0
        %566 = vmatprep.subr.mxu0 0.0
        %567 = vmatpush1.msra.mxu0 0.0
        %568 = vmatprep.subr.mxu0 0.0
        %569 = vmatpush1.msra.mxu0 0.0
        %570 = vmatprep.subr.mxu0 0.0
        %571 = vmatpush1.msra.mxu0 0.0
        %572 = vmatprep.subr.mxu0 0.0
        %573 = vmatpush1.msra.mxu0 0.0
        %574 = vmatprep.subr.mxu0 0.0
        %575 = vmatpush1.msra.mxu0 0.0
        %576 = vmatprep.subr.mxu0 0.0
        %577 = vmatpush1.msra.mxu0 0.0
        %578 = vmatprep.subr.mxu0 0.0
        %579 = vmatpush1.msra.mxu0 0.0
        %580 = vmatprep.subr.mxu0 0.0
        %581 = vmatpush1.msra.mxu0 0.0
        %582 = vmatprep.subr.mxu0 0.0
        %583 = vmatpush1.msra.mxu0 0.0
        %584 = vmatprep.subr.mxu0 0.0
        %585 = vmatpush1.msra.mxu0 0.0
        %586 = vmatprep.subr.mxu0 0.0
        %587 = vmatpush1.msra.mxu0 0.0
        %588 = vmatprep.subr.mxu0 0.0
        %589 = vmatpush1.msra.mxu0 0.0
        %590 = vmatprep.subr.mxu0 0.0
        %591 = vmatpush1.msra.mxu0 0.0
        %592 = vmatprep.subr.mxu0 0.0
        %593 = vmatpush1.msra.mxu0 0.0
        %594 = vmatprep.subr.mxu0 0.0
        %595 = vmatpush1.msra.mxu0 0.0
        %596 = vmatprep.mubr.f32.mxu0 0.0
        %597 = vmatmul.mubr.f32.gmra.mrb[0].mxu0 %v527
        %v598 = vpop.f32.mrb[0].mxu0
        %v599 = vadd.f32 %v524, %v598
        %v600 = vpop.f32.mrb[0].mxu0
        %601 = vmatprep.mubr.f32.mxu0 0.0
        %602 = vmatmul.mubr.f32.gmra.mrb[0].mxu0 %v530
        %v603 = vpop.f32.mrb[0].mxu0
        %v604 = vadd.f32 %v524, %v603
        %v605 = vpop.f32.mrb[0].mxu0
        %606 = vdwg.mxu0
        %vm607 = vcmask 31744
        %608 = vst.msk [vmem:[%s313] sm:$0xff] %vm607, %v599
        %609 = vst.msk [vmem:[%s313 + $0x8] sm:$0xff] %vm607, %v604
        %s610 = sand.u32 %s182, 1
        %s611 = sand.u32 %s182, 1
        %s612 = smul.addr %s611, 16
        %s613 = scalar_lea.vmem [#allocation6], %s612
        // Predicated region
        $region57: #{tpu_custom_call.1} parent=47 // pred_check
          %p614 = pneg %p192
        $region58: #{tpu_custom_call.1} parent=47 // pred_check_branch
          %616 = sbr.rel (%p614) target = $region60
        $region59: #{tpu_custom_call.1} parent=47 // pred_region
          %s617 = smul.u32 2, %s22
          %s618 = ssub.s32 3, %s617
          %p619 = scmp.lt.s32.totalorder %s618, 2
          %s620 = scalar_select %p619, %s618, 2
          %s621 = smul.u32 128, %s620
          %p622 = scmp.ne.s32.totalorder 0, %s621
          %s623 = smul.addr %s617, 8
          %s624 = scalar_lea.vmem %s7, %s623
          // Predicated region
          $region61: #{tpu_custom_call.1} parent=59 // pred_check
            %p625 = pneg %p622
          $region62: #{tpu_custom_call.1} parent=59 // pred_check_branch
            %627 = sbr.rel (%p625) target = $region64
          $region63: #{tpu_custom_call.1} parent=59 // pred_region
            // Predicated region
            $region65: #{tpu_custom_call.1} parent=63 // pred_check
              _
            $region66: #{tpu_custom_call.1} parent=63 // pred_check_branch
              %629 = sbr.rel (0) target = $region68
            $region67: #{tpu_custom_call.1} parent=63 // pred_region
              // Predicated region
              $region87: #{tpu_custom_call.1} parent=67 // pred_check
                _
              $region88: #{tpu_custom_call.1} parent=67 // pred_check_branch
                %680 = sbr.rel (0) target = $region90
              $region89: #{tpu_custom_call.1} parent=67 // pred_region
                %s681 = sshrl.u32 %s620, 1
                // While loop
                $region91: #{tpu_custom_call.1} parent=89 // loop_pre_header
                  _
                $region92: #{tpu_custom_call.1} parent=89 // loop_header
                  %s683 = sphi 0, %s685
                  %p684 = scmp.ge.s32.totalorder %s683, %s681
                  %s688 = sphi 0, %s697
                  %s689 = sphi %s613, %s700
                  %s690 = sphi %s624, %s701
                $region93: #{tpu_custom_call.1} parent=89 // loop_header_branch
                  %687 = sbr.rel (%p684) target = $region97
                $region94: #{tpu_custom_call.1} parent=89 // loop_body
                  %v691 = vld [vmem:[%s689] sm:$0xff]
                  %692 = vst [vmem:[%s690] sm:$0xff] %v691
                  %v693 = vld [vmem:[%s689 + $0x8] sm:$0xff]
                  %694 = vst [vmem:[%s690 + $0x8] sm:$0xff] %v693
                  %s695 = sadd.s32 1, %s688
                  %p696 = scmp.ge.s32.totalorder %s695, %s681
                  %s697 = scalar_select %p696, 0, %s695
                  %s698 = smul.u32 %s697, 16
                  %s699 = smul.u32 %s697, 16
                  %s700 = scalar_lea.vmem %s613, %s698 [#allocation6]
                  %s701 = scalar_lea.vmem %s624, %s699
                $region95: #{tpu_custom_call.1} parent=89 // loop_footer
                  %s685 = sadd.s32 %s683, 1
                $region96: #{tpu_custom_call.1} parent=89 // loop_footer_branch
                  %682 = sbr.rel target = $region92
                $region97: #{tpu_custom_call.1} parent=89 // loop_exit
                  _
                %s702 = sshrl.u32 %s620, 1
                %s703 = sand.u32 %s620, 1
                %s704 = smul.u32 %s702, 2
                %s705 = smul.u32 8, %s704
                %s706 = scalar_lea.vmem %s613, %s705 [#allocation6]
                %s707 = smul.u32 8, %s704
                %s708 = scalar_lea.vmem %s624, %s707
                // While loop
                $region98: #{tpu_custom_call.1} parent=89 // loop_pre_header
                  _
                $region99: #{tpu_custom_call.1} parent=89 // loop_header
                  %s710 = sphi 0, %s712
                  %p711 = scmp.ge.s32.totalorder %s710, %s703
                  %s715 = sphi 0, %s722
                  %s716 = sphi %s706, %s725
                  %s717 = sphi %s708, %s726
                $region100: #{tpu_custom_call.1} parent=89 // loop_header_branch
                  %714 = sbr.rel (%p711) target = $region104
                $region101: #{tpu_custom_call.1} parent=89 // loop_body
                  %v718 = vld [vmem:[%s716] sm:$0xff]
                  %719 = vst [vmem:[%s717] sm:$0xff] %v718
                  %s720 = sadd.s32 1, %s715
                  %p721 = scmp.ge.s32.totalorder %s720, %s703
                  %s722 = scalar_select %p721, 0, %s720
                  %s723 = smul.u32 %s722, 8
                  %s724 = smul.u32 %s722, 8
                  %s725 = scalar_lea.vmem %s706, %s723 [#allocation6]
                  %s726 = scalar_lea.vmem %s708, %s724
                $region102: #{tpu_custom_call.1} parent=89 // loop_footer
                  %s712 = sadd.s32 %s710, 1
                $region103: #{tpu_custom_call.1} parent=89 // loop_footer_branch
                  %709 = sbr.rel target = $region99
                $region104: #{tpu_custom_call.1} parent=89 // loop_exit
                  _
              $region90: #{tpu_custom_call.1} parent=67 // pred_fallthru
                _
              // Predicated region
              $region105: #{tpu_custom_call.1} parent=67 // pred_check
                _
              $region106: #{tpu_custom_call.1} parent=67 // pred_check_branch
                %728 = sbr.rel target = $region108
              $region107: #{tpu_custom_call.1} parent=67 // pred_region
                _
              $region108: #{tpu_custom_call.1} parent=67 // pred_fallthru
                _
            $region68: #{tpu_custom_call.1} parent=63 // pred_fallthru
              _
            // Predicated region
            $region69: #{tpu_custom_call.1} parent=63 // pred_check
              _
            $region70: #{tpu_custom_call.1} parent=63 // pred_check_branch
              %631 = sbr.rel target = $region72
            $region71: #{tpu_custom_call.1} parent=63 // pred_region
              %s633 = sshrl.u32 %s620, 1
              // While loop
              $region73: #{tpu_custom_call.1} parent=71 // loop_pre_header
                _
              $region74: #{tpu_custom_call.1} parent=71 // loop_header
                %s635 = sphi 0, %s637
                %p636 = scmp.ge.s32.totalorder %s635, %s633
                %s640 = sphi 0, %s649
                %s641 = sphi %s613, %s652
                %s642 = sphi %s624, %s653
              $region75: #{tpu_custom_call.1} parent=71 // loop_header_branch
                %639 = sbr.rel (%p636) target = $region79
              $region76: #{tpu_custom_call.1} parent=71 // loop_body
                %v643 = vld [vmem:[%s641] sm:$0xff]
                %644 = vst [vmem:[%s642] sm:$0xff] %v643
                %v645 = vld [vmem:[%s641 + $0x8] sm:$0xff]
                %646 = vst [vmem:[%s642 + $0x8] sm:$0xff] %v645
                %s647 = sadd.s32 1, %s640
                %p648 = scmp.ge.s32.totalorder %s647, %s633
                %s649 = scalar_select %p648, 0, %s647
                %s650 = smul.u32 %s649, 16
                %s651 = smul.u32 %s649, 16
                %s652 = scalar_lea.vmem %s613, %s650 [#allocation6]
                %s653 = scalar_lea.vmem %s624, %s651
              $region77: #{tpu_custom_call.1} parent=71 // loop_footer
                %s637 = sadd.s32 %s635, 1
              $region78: #{tpu_custom_call.1} parent=71 // loop_footer_branch
                %634 = sbr.rel target = $region74
              $region79: #{tpu_custom_call.1} parent=71 // loop_exit
                _
              %s654 = sshrl.u32 %s620, 1
              %s655 = sand.u32 %s620, 1
              %s656 = smul.u32 %s654, 2
              %s657 = smul.u32 8, %s656
              %s658 = scalar_lea.vmem %s613, %s657 [#allocation6]
              %s659 = smul.u32 8, %s656
              %s660 = scalar_lea.vmem %s624, %s659
              // While loop
              $region80: #{tpu_custom_call.1} parent=71 // loop_pre_header
                _
              $region81: #{tpu_custom_call.1} parent=71 // loop_header
                %s662 = sphi 0, %s664
                %p663 = scmp.ge.s32.totalorder %s662, %s655
                %s667 = sphi 0, %s674
                %s668 = sphi %s658, %s677
                %s669 = sphi %s660, %s678
              $region82: #{tpu_custom_call.1} parent=71 // loop_header_branch
                %666 = sbr.rel (%p663) target = $region86
              $region83: #{tpu_custom_call.1} parent=71 // loop_body
                %v670 = vld [vmem:[%s668] sm:$0xff]
                %671 = vst [vmem:[%s669] sm:$0xff] %v670
                %s672 = sadd.s32 1, %s667
                %p673 = scmp.ge.s32.totalorder %s672, %s655
                %s674 = scalar_select %p673, 0, %s672
                %s675 = smul.u32 %s674, 8
                %s676 = smul.u32 %s674, 8
                %s677 = scalar_lea.vmem %s658, %s675 [#allocation6]
                %s678 = scalar_lea.vmem %s660, %s676
              $region84: #{tpu_custom_call.1} parent=71 // loop_footer
                %s664 = sadd.s32 %s662, 1
              $region85: #{tpu_custom_call.1} parent=71 // loop_footer_branch
                %661 = sbr.rel target = $region81
              $region86: #{tpu_custom_call.1} parent=71 // loop_exit
                _
            $region72: #{tpu_custom_call.1} parent=63 // pred_fallthru
              _
          $region64: #{tpu_custom_call.1} parent=59 // pred_fallthru
            _
          %729 = vnop
        $region60: #{tpu_custom_call.1} parent=47 // pred_fallthru
          _
      $region48: #{tpu_custom_call.1} parent=5 // pred_fallthru
        _
      %p730 = scmp.le.s32.totalorder 2, %s17
      // Predicated region
      $region109: #{tpu_custom_call.1} parent=5 // pred_check
        %p731 = pneg %p730
      $region110: #{tpu_custom_call.1} parent=5 // pred_check_branch
        %733 = sbr.rel (%p731) target = $region112
      $region111: #{tpu_custom_call.1} parent=5 // pred_region
        %s734 = ssub.s32 %s17, 2
        // Predicated region
        $region113: #{tpu_custom_call.1} parent=111 // pred_check
          %p735 = pneg %p198
        $region114: #{tpu_custom_call.1} parent=111 // pred_check_branch
          %737 = sbr.rel (%p735) target = $region116
        $region115: #{tpu_custom_call.1} parent=111 // pred_region
          %s738 = sand.u32 %s183, 1
          %s739 = sand.u32 %s183, 1
          %s740 = smul.addr %s739, 16
          %s741 = scalar_lea.vmem [#allocation6], %s740
        $region116: #{tpu_custom_call.1} parent=111 // pred_fallthru
          _
      $region112: #{tpu_custom_call.1} parent=5 // pred_fallthru
        _
    $region6: #{tpu_custom_call.1} parent=1 // loop_footer
      %s21 = sadd.s32 1, %s17
    $region7: #{tpu_custom_call.1} parent=1 // loop_footer_branch
      %16 = sbr.rel target = $region3
    $region8: #{tpu_custom_call.1} parent=1 // loop_exit
      _
    %742 = vsyncpa [#allocation3], 1
    %s743 = scalar_lea.sflag [#allocation3], 1
    %744 = vsyncpa %s743, 1
    %745 = vsyncpa [#allocation5], 1

// kernel: tpu_custom_call.1
$region0: #{tpu_custom_call.1}
  #allocation0 [shape = 'u32[]', space=smem, size = 0x4, offset = 0x4, fixed_abs, tag = 'smem constant byte address 0x4 - core index']
  #allocation1 [shape = 'u32[144,128]{1,0:T(1,128)}', space=vmem, size = 0x12000, scoped, tag = 'internal scratch']
  %s0 = inlined_call_operand.hbm [shape: f32[18,32], index: 0, kind: input, shape index: {}]
  %s1 = inlined_call_operand.vmem [shape: f32[32,32], index: 1, kind: input, shape index: {}]
  %s2 = inlined_call_operand.vmem [shape: f32[1,32], index: 2, kind: input, shape index: {}]
  %s3 = inlined_call_operand.hbm [shape: f32[32,32], index: 3, kind: input, shape index: {}]
  %s4 = inlined_call_operand.vmem [shape: f32[1,32], index: 4, kind: input, shape index: {}]
  %s5 = inlined_call_operand.vmem [shape: f32[32,4], index: 5, kind: input, shape index: {}]
  %s6 = inlined_call_operand.vmem [shape: f32[1,4], index: 6, kind: input, shape index: {}]
  %s7 = inlined_call_operand.vmem [shape: f32[18,4], index: 7, kind: output, shape index: {}]
  %s8 = sld [smem:[#allocation0]]
  $region117: #{tpu_custom_call.1} parent=0
    _
  %s10 = ssub.s32 1, %s8
  %s11 = scalar_select 0, %s10, %s8
  $region1: #{tpu_custom_call.1} parent=0
    #allocation2 [shape = 'u8[16384]{0}', space=vmem, size = 0x4000, scoped, tag = 'input window, operand 0']
    #allocation3 [shape = 's32[2]{0}', space=sflag, size = 0x8, scoped, tag = 'scoped memory for tpu_custom_call.1']
    #allocation4 [shape = 'u8[16384]{0}', space=vmem, size = 0x4000, scoped, tag = 'input window, operand 3, single buffered']
    #allocation5 [shape = 's32[1]{0}', space=sflag, size = 0x4, scoped, tag = 'scoped memory for tpu_custom_call.1']
    #allocation6 [shape = 'u8[16384]{0}', space=vmem, size = 0x4000, scoped, tag = 'output window, operand 0']
    %12 = vsyncpa [#allocation3], 0
    %s13 = scalar_lea.sflag [#allocation3], 1
    %14 = vsyncpa %s13, 0
    %15 = vsyncpa [#allocation5], 0
    loop: start=0, step=1, limit=4
    $region2: #{tpu_custom_call.1} parent=1 // loop_pre_header
      _
    $region3: #{tpu_custom_call.1} parent=1 // loop_header
      %s17 = sphi 0, %s21
      %p18 = scmp.ge.s32.totalorder %s17, 4
      %s27 = sphi 0, %s29
      %s30 = sphi 0, %s27
      %s31 = sphi 0, %s30
      %s47 = sphi 0, %s31
      %s51 = sphi 0, %s51
      %s53 = sphi 0, %s51
      %s54 = sphi 0, %s53
      %s68 = sphi 0, %s54
      %s72 = sphi 0, %s72
      %s74 = sphi 0, %s72
      %s75 = sphi 0, %s74
      %s89 = sphi 0, %s75
      %s93 = sphi 0, %s93
      %s95 = sphi 0, %s93
      %s96 = sphi 0, %s95
      %s110 = sphi 0, %s96
      %s114 = sphi 0, %s114
      %s116 = sphi 0, %s114
      %s117 = sphi 0, %s116
      %s131 = sphi 0, %s117
      %s135 = sphi 0, %s135
      %s137 = sphi 0, %s135
      %s138 = sphi 0, %s137
      %s152 = sphi 0, %s138
      %s156 = sphi 0, %s156
      %s158 = sphi 0, %s156
      %s159 = sphi 0, %s158
      %s173 = sphi 0, %s159
      %s179 = sphi 0, %s181
      %s182 = sphi 0, %s179
      %s183 = sphi 0, %s182
      %s199 = sphi 0, %s183
    $region4: #{tpu_custom_call.1} parent=1 // loop_header_branch
      %20 = sbr.rel (%p18) target = $region8
    $region5: #{tpu_custom_call.1} parent=1 // loop_body
      %s22 = ssub.s32 %s17, 1
      %s23 = ssub.s32 %s17, 2
      %s24 = sadd.s32 %s17, 1
      %s25 = ssub.s32 %s17, %s24
      %p26 = scmp.eq.s32.totalorder %s25, 0
      %s28 = sadd.s32 %s27, 1
      %s29 = scalar_select %p26, %s27, %s28
      %p32 = pneg %p26
      %p33 = scmp.eq.s32.totalorder %s17, 1
      %p34 = por %p32, %p33
      %p35 = scmp.ne.s32.totalorder %s27, %s30
      %p36 = scmp.eq.s32.totalorder %s17, 0
      %p37 = por %p35, %p36
      %p38 = scmp.ne.s32.totalorder %s27, %s30
      %p39 = scmp.eq.s32.totalorder %s22, 1
      %p40 = por %p38, %p39
      %p41 = scmp.ne.s32.totalorder %s30, %s31
      %p42 = scmp.eq.s32.totalorder %s22, 0
      %p43 = por %p41, %p42
      %p44 = scmp.ne.s32.totalorder %s30, %s31
      %p45 = scmp.eq.s32.totalorder %s23, 1
      %p46 = por %p44, %p45
      %p48 = scmp.ne.s32.totalorder %s31, %s47
      %p49 = scmp.eq.s32.totalorder %s23, 0
      %p50 = por %p48, %p49
      %s52 = sadd.s32 %s51, 1
      %p55 = scmp.eq.s32.totalorder %s17, 1
      %p56 = scmp.ne.s32.totalorder %s51, %s53
      %p57 = scmp.eq.s32.totalorder %s17, 0
      %p58 = por %p56, %p57
      %p59 = scmp.ne.s32.totalorder %s51, %s53
      %p60 = scmp.eq.s32.totalorder %s22, 1
      %p61 = por %p59, %p60
      %p62 = scmp.ne.s32.totalorder %s53, %s54
      %p63 = scmp.eq.s32.totalorder %s22, 0
      %p64 = por %p62, %p63
      %p65 = scmp.ne.s32.totalorder %s53, %s54
      %p66 = scmp.eq.s32.totalorder %s23, 1
      %p67 = por %p65, %p66
      %p69 = scmp.ne.s32.totalorder %s54, %s68
      %p70 = scmp.eq.s32.totalorder %s23, 0
      %p71 = por %p69, %p70
      %s73 = sadd.s32 %s72, 1
      %p76 = scmp.eq.s32.totalorder %s17, 1
      %p77 = scmp.ne.s32.totalorder %s72, %s74
      %p78 = scmp.eq.s32.totalorder %s17, 0
      %p79 = por %p77, %p78
      %p80 = scmp.ne.s32.totalorder %s72, %s74
      %p81 = scmp.eq.s32.totalorder %s22, 1
      %p82 = por %p80, %p81
      %p83 = scmp.ne.s32.totalorder %s74, %s75
      %p84 = scmp.eq.s32.totalorder %s22, 0
      %p85 = por %p83, %p84
      %p86 = scmp.ne.s32.totalorder %s74, %s75
      %p87 = scmp.eq.s32.totalorder %s23, 1
      %p88 = por %p86, %p87
      %p90 = scmp.ne.s32.totalorder %s75, %s89
      %p91 = scmp.eq.s32.totalorder %s23, 0
      %p92 = por %p90, %p91
      %s94 = sadd.s32 %s93, 1
      %p97 = scmp.eq.s32.totalorder %s17, 1
      %p98 = scmp.ne.s32.totalorder %s93, %s95
      %p99 = scmp.eq.s32.totalorder %s17, 0
      %p100 = por %p98, %p99
      %p101 = scmp.ne.s32.totalorder %s93, %s95
      %p102 = scmp.eq.s32.totalorder %s22, 1
      %p103 = por %p101, %p102
      %p104 = scmp.ne.s32.totalorder %s95, %s96
      %p105 = scmp.eq.s32.totalorder %s22, 0
      %p106 = por %p104, %p105
      %p107 = scmp.ne.s32.totalorder %s95, %s96
      %p108 = scmp.eq.s32.totalorder %s23, 1
      %p109 = por %p107, %p108
      %p111 = scmp.ne.s32.totalorder %s96, %s110
      %p112 = scmp.eq.s32.totalorder %s23, 0
      %p113 = por %p111, %p112
      %s115 = sadd.s32 %s114, 1
      %p118 = scmp.eq.s32.totalorder %s17, 1
      %p119 = scmp.ne.s32.totalorder %s114, %s116
      %p120 = scmp.eq.s32.totalorder %s17, 0
      %p121 = por %p119, %p120
      %p122 = scmp.ne.s32.totalorder %s114, %s116
      %p123 = scmp.eq.s32.totalorder %s22, 1
      %p124 = por %p122, %p123
      %p125 = scmp.ne.s32.totalorder %s116, %s117
      %p126 = scmp.eq.s32.totalorder %s22, 0
      %p127 = por %p125, %p126
      %p128 = scmp.ne.s32.totalorder %s116, %s117
      %p129 = scmp.eq.s32.totalorder %s23, 1
      %p130 = por %p128, %p129
      %p132 = scmp.ne.s32.totalorder %s117, %s131
      %p133 = scmp.eq.s32.totalorder %s23, 0
      %p134 = por %p132, %p133
      %s136 = sadd.s32 %s135, 1
      %p139 = scmp.eq.s32.totalorder %s17, 1
      %p140 = scmp.ne.s32.totalorder %s135, %s137
      %p141 = scmp.eq.s32.totalorder %s17, 0
      %p142 = por %p140, %p141
      %p143 = scmp.ne.s32.totalorder %s135, %s137
      %p144 = scmp.eq.s32.totalorder %s22, 1
      %p145 = por %p143, %p144
      %p146 = scmp.ne.s32.totalorder %s137, %s138
      %p147 = scmp.eq.s32.totalorder %s22, 0
      %p148 = por %p146, %p147
      %p149 = scmp.ne.s32.totalorder %s137, %s138
      %p150 = scmp.eq.s32.totalorder %s23, 1
      %p151 = por %p149, %p150
      %p153 = scmp.ne.s32.totalorder %s138, %s152
      %p154 = scmp.eq.s32.totalorder %s23, 0
      %p155 = por %p153, %p154
      %s157 = sadd.s32 %s156, 1
      %p160 = scmp.eq.s32.totalorder %s17, 1
      %p161 = scmp.ne.s32.totalorder %s156, %s158
      %p162 = scmp.eq.s32.totalorder %s17, 0
      %p163 = por %p161, %p162
      %p164 = scmp.ne.s32.totalorder %s156, %s158
      %p165 = scmp.eq.s32.totalorder %s22, 1
      %p166 = por %p164, %p165
      %p167 = scmp.ne.s32.totalorder %s158, %s159
      %p168 = scmp.eq.s32.totalorder %s22, 0
      %p169 = por %p167, %p168
      %p170 = scmp.ne.s32.totalorder %s158, %s159
      %p171 = scmp.eq.s32.totalorder %s23, 1
      %p172 = por %p170, %p171
      %p174 = scmp.ne.s32.totalorder %s159, %s173
      %p175 = scmp.eq.s32.totalorder %s23, 0
      %p176 = por %p174, %p175
      %s177 = ssub.s32 %s17, %s24
      %p178 = scmp.eq.s32.totalorder %s177, 0
      %s180 = sadd.s32 %s179, 1
      %s181 = scalar_select %p178, %s179, %s180
      %p184 = pneg %p178
      %p185 = scmp.eq.s32.totalorder %s17, 1
      %p186 = por %p184, %p185
      %p187 = scmp.ne.s32.totalorder %s179, %s182
      %p188 = scmp.eq.s32.totalorder %s17, 0
      %p189 = por %p187, %p188
      %p190 = scmp.ne.s32.totalorder %s179, %s182
      %p191 = scmp.eq.s32.totalorder %s22, 1
      %p192 = por %p190, %p191
      %p193 = scmp.ne.s32.totalorder %s182, %s183
      %p194 = scmp.eq.s32.totalorder %s22, 0
      %p195 = por %p193, %p194
      %p196 = scmp.ne.s32.totalorder %s182, %s183
      %p197 = scmp.eq.s32.totalorder %s23, 1
      %p198 = por %p196, %p197
      %p200 = scmp.ne.s32.totalorder %s183, %s199
      %p201 = scmp.eq.s32.totalorder %s23, 0
      %p202 = por %p200, %p201
      %p203 = scmp.le.s32.totalorder 1, %s17
      %p204 = scmp.lt.s32.totalorder %s17, 3
      %p205 = pnand %p203, %p204
      %p206 = pneg %p205
      // Predicated region
      $region9: #{tpu_custom_call.1} parent=5 // pred_check
        _
      $region10: #{tpu_custom_call.1} parent=5 // pred_check_branch
        %208 = sbr.rel (%p205) target = $region12
      $region11: #{tpu_custom_call.1} parent=5 // pred_region
        %s209 = ssub.s32 %s17, 1
        // Predicated region
        $region13: #{tpu_custom_call.1} parent=11 // pred_check
          %p210 = pneg %p64
        $region14: #{tpu_custom_call.1} parent=11 // pred_check_branch
          %212 = sbr.rel (%p210) target = $region16
        $region15: #{tpu_custom_call.1} parent=11 // pred_region
          _
        $region16: #{tpu_custom_call.1} parent=11 // pred_fallthru
          _
        // Predicated region
        $region17: #{tpu_custom_call.1} parent=11 // pred_check
          %p213 = pneg %p85
        $region18: #{tpu_custom_call.1} parent=11 // pred_check_branch
          %215 = sbr.rel (%p213) target = $region20
        $region19: #{tpu_custom_call.1} parent=11 // pred_region
          _
        $region20: #{tpu_custom_call.1} parent=11 // pred_fallthru
          _
        // Predicated region
        $region21: #{tpu_custom_call.1} parent=11 // pred_check
          %p216 = pneg %p106
        $region22: #{tpu_custom_call.1} parent=11 // pred_check_branch
          %218 = sbr.rel (%p216) target = $region24
        $region23: #{tpu_custom_call.1} parent=11 // pred_region
          %s220 = ssub.s32 512, 512
          %221 = vsyncadd [#allocation5], %s220
          %s222 = sshll.u32 [#allocation4], 4
          %s223 = int_to_ptr.vmem [resolvable:$true] %s222
          %228 = dma.hbm_to_vmem [thread:$0]  %s3, 512, %s223, [#allocation5], 128, 128, 8
        $region24: #{tpu_custom_call.1} parent=11 // pred_fallthru
          _
        // Predicated region
        $region25: #{tpu_custom_call.1} parent=11 // pred_check
          %p229 = pneg %p127
        $region26: #{tpu_custom_call.1} parent=11 // pred_check_branch
          %231 = sbr.rel (%p229) target = $region28
        $region27: #{tpu_custom_call.1} parent=11 // pred_region
          _
        $region28: #{tpu_custom_call.1} parent=11 // pred_fallthru
          _
        // Predicated region
        $region29: #{tpu_custom_call.1} parent=11 // pred_check
          %p232 = pneg %p148
        $region30: #{tpu_custom_call.1} parent=11 // pred_check_branch
          %234 = sbr.rel (%p232) target = $region32
        $region31: #{tpu_custom_call.1} parent=11 // pred_region
          _
        $region32: #{tpu_custom_call.1} parent=11 // pred_fallthru
          _
        // Predicated region
        $region33: #{tpu_custom_call.1} parent=11 // pred_check
          %p235 = pneg %p169
        $region34: #{tpu_custom_call.1} parent=11 // pred_check_branch
          %237 = sbr.rel (%p235) target = $region36
        $region35: #{tpu_custom_call.1} parent=11 // pred_region
          _
        $region36: #{tpu_custom_call.1} parent=11 // pred_fallthru
          _
      $region12: #{tpu_custom_call.1} parent=5 // pred_fallthru
        _
      %p238 = scmp.lt.s32.totalorder %s17, 2
      // Predicated region
      $region37: #{tpu_custom_call.1} parent=5 // pred_check
        %p239 = pneg %p238
      $region38: #{tpu_custom_call.1} parent=5 // pred_check_branch
        %241 = sbr.rel (%p239) target = $region40
      $region39: #{tpu_custom_call.1} parent=5 // pred_region
        // Predicated region
        $region41: #{tpu_custom_call.1} parent=39 // pred_check
          %p242 = pneg %p37
        $region42: #{tpu_custom_call.1} parent=39 // pred_check_branch
          %244 = sbr.rel (%p242) target = $region44
        $region43: #{tpu_custom_call.1} parent=39 // pred_region
          %s245 = sand.u32 %s27, 1
          %s246 = scalar_lea.sflag [#allocation3], %s245
          %s247 = sand.u32 %s27, 1
          %s248 = smul.addr %s247, 16
          %s249 = scalar_lea.vmem [#allocation2], %s248
          %s250 = smul.u32 2, %s17
          %s251 = ssub.s32 3, %s250
          %p252 = scmp.lt.s32.totalorder %s251, 2
          %s253 = scalar_select %p252, %s251, 2
          %s254 = smul.u32 128, %s253
          %s256 = ssub.s32 256, %s254
          %257 = vsyncadd %s246, %s256
          %p258 = scmp.ne.s32.totalorder 0, %s254
          %s259 = smul.addr %s250, 128
          %s260 = scalar_lea.hbm %s0, %s259
          %s261 = smul.u32 8, %s253
          %s262 = sshll.u32 %s249, 4
          %s263 = int_to_ptr.vmem [resolvable:$true] %s262
          %s264 = sshll.u32 %s261, 4
          %268 = dma.hbm_to_vmem [thread:$0]  (%p258), %s260, %s264, %s263, %s246, 128, 128, 8
        $region44: #{tpu_custom_call.1} parent=39 // pred_fallthru
          _
      $region40: #{tpu_custom_call.1} parent=5 // pred_fallthru
        _
      %p269 = scmp.le.s32.totalorder 1, %s17
      %p270 = scmp.lt.s32.totalorder %s17, 3
      %p271 = pnand %p269, %p270
      %p272 = pneg %p271
      // Predicated region
      $region45: #{tpu_custom_call.1} parent=5 // pred_check
        _
      $region46: #{tpu_custom_call.1} parent=5 // pred_check_branch
        %274 = sbr.rel (%p271) target = $region48
      $region47: #{tpu_custom_call.1} parent=5 // pred_region
        %s275 = ssub.s32 %s17, 1
        %s276 = sand.u32 %s30, 1
        %s277 = scalar_lea.sflag [#allocation3], %s276
        %s278 = sand.u32 %s30, 1
        %s279 = smul.addr %s278, 16
        %s280 = scalar_lea.vmem [#allocation2], %s279
        // Predicated region
        $region49: #{tpu_custom_call.1} parent=47 // pred_check
          %p281 = pneg %p43
        $region50: #{tpu_custom_call.1} parent=47 // pred_check_branch
          %283 = sbr.rel (%p281) target = $region52
        $region51: #{tpu_custom_call.1} parent=47 // pred_region
          %284 = dma.done %s277, 256
        $region52: #{tpu_custom_call.1} parent=47 // pred_fallthru
          _
        // Predicated region
        $region53: #{tpu_custom_call.1} parent=47 // pred_check
          %p285 = pneg %p106
        $region54: #{tpu_custom_call.1} parent=47 // pred_check_branch
          %287 = sbr.rel (%p285) target = $region56
        $region55: #{tpu_custom_call.1} parent=47 // pred_region
          %288 = dma.done [#allocation5], 512
        $region56: #{tpu_custom_call.1} parent=47 // pred_fallthru
          _
        %s289 = sand.u32 %s30, 1
        %s290 = scalar_lea.sflag [#allocation3], %s289
        %s291 = sand.u32 %s30, 1
        %s292 = smul.addr %s291, 16
        %s293 = scalar_lea.vmem [#allocation2], %s292
        %p294 = pneg %p43
        %p295 = pneg %p40
        %p296 = pneg %p64
        %p297 = pneg %p61
        %p298 = pneg %p85
        %p299 = pneg %p82
        %p300 = pneg %p106
        %p301 = pneg %p103
        %p302 = pneg %p127
        %p303 = pneg %p124
        %p304 = pneg %p148
        %p305 = pneg %p145
        %p306 = pneg %p169
        %p307 = pneg %p166
        %p308 = pneg %p195
        %p309 = pneg %p192
        %s310 = sand.u32 %s182, 1
        %s311 = sand.u32 %s182, 1
        %s312 = smul.addr %s311, 16
        %s313 = scalar_lea.vmem [#allocation6], %s312
        %s314 = smul.u32 2, %s22
        %s315 = ssub.s32 3, %s314
        %p316 = scmp.lt.s32.totalorder %s315, 2
        %s317 = scalar_select %p316, %s315, 2
        %s318 = smul.u32 128, %s317
        %s319 = smul.u32 2, %s22
        %s320 = ssub.s32 3, %s319
        %p321 = scmp.lt.s32.totalorder %s320, 2
        %s322 = scalar_select %p321, %s320, 2
        %s323 = smul.u32 128, %s322
        %v324 = vld [vmem:[%s280] sm:$0xff]
        %v325 = vld [vmem:[%s280 + $0x8] sm:$0xff]
        %v326 = vld [vmem:[%s1] sm:$0xff]
        %v327 = vld [vmem:[%s1 + $0x8] sm:$0xff]
        %v328 = vld [vmem:[%s1 + $0x10] sm:$0xff]
        %v329 = vld [vmem:[%s1 + $0x18] sm:$0xff]
        %v330 = vld [vmem:[%s2] sm:$0x1]
        %v332 = vlaneseq
        %v333 = vshrl.u32 %v332, 7
        %v334 = vsub.s32 0, %v333
        %v335 = vrot.slane %v330, %v334
        %vm337 = vcmask 261120
        %v339 = vsel %vm337, %v324, 0
        %v342 = vsel %vm337, %v325, 0
        %344 = vmatprep.subr.mxu0 0.0
        %345 = vmatpush1.msra.mxu0 %v326
        %346 = vmatprep.subr.mxu0 0.0
        %347 = vmatpush1.msra.mxu0 %v327
        %348 = vmatprep.subr.mxu0 0.0
        %349 = vmatpush1.msra.mxu0 %v328
        %350 = vmatprep.subr.mxu0 0.0
        %351 = vmatpush1.msra.mxu0 %v329
        %352 = vmatprep.subr.mxu0 0.0
        %353 = vmatpush1.msra.mxu0 0.0
        %354 = vmatprep.subr.mxu0 0.0
        %355 = vmatpush1.msra.mxu0 0.0
        %356 = vmatprep.subr.mxu0 0.0
        %357 = vmatpush1.msra.mxu0 0.0
        %358 = vmatprep.subr.mxu0 0.0
        %359 = vmatpush1.msra.mxu0 0.0
        %360 = vmatprep.subr.mxu0 0.0
        %361 = vmatpush1.msra.mxu0 0.0
        %362 = vmatprep.subr.mxu0 0.0
        %363 = vmatpush1.msra.mxu0 0.0
        %364 = vmatprep.subr.mxu0 0.0
        %365 = vmatpush1.msra.mxu0 0.0
        %366 = vmatprep.subr.mxu0 0.0
        %367 = vmatpush1.msra.mxu0 0.0
        %368 = vmatprep.subr.mxu0 0.0
        %369 = vmatpush1.msra.mxu0 0.0
        %370 = vmatprep.subr.mxu0 0.0
        %371 = vmatpush1.msra.mxu0 0.0
        %372 = vmatprep.subr.mxu0 0.0
        %373 = vmatpush1.msra.mxu0 0.0
        %374 = vmatprep.subr.mxu0 0.0
        %375 = vmatpush1.msra.mxu0 0.0
        %376 = vmatprep.subr.mxu0 0.0
        %377 = vmatpush1.msra.mxu0 0.0
        %378 = vmatprep.subr.mxu0 0.0
        %379 = vmatpush1.msra.mxu0 0.0
        %380 = vmatprep.subr.mxu0 0.0
        %381 = vmatpush1.msra.mxu0 0.0
        %382 = vmatprep.subr.mxu0 0.0
        %383 = vmatpush1.msra.mxu0 0.0
        %384 = vmatprep.subr.mxu0 0.0
        %385 = vmatpush1.msra.mxu0 0.0
        %386 = vmatprep.subr.mxu0 0.0
        %387 = vmatpush1.msra.mxu0 0.0
        %388 = vmatprep.subr.mxu0 0.0
        %389 = vmatpush1.msra.mxu0 0.0
        %390 = vmatprep.subr.mxu0 0.0
        %391 = vmatpush1.msra.mxu0 0.0
        %392 = vmatprep.subr.mxu0 0.0
        %393 = vmatpush1.msra.mxu0 0.0
        %394 = vmatprep.subr.mxu0 0.0
        %395 = vmatpush1.msra.mxu0 0.0
        %396 = vmatprep.subr.mxu0 0.0
        %397 = vmatpush1.msra.mxu0 0.0
        %398 = vmatprep.subr.mxu0 0.0
        %399 = vmatpush1.msra.mxu0 0.0
        %400 = vmatprep.subr.mxu0 0.0
        %401 = vmatpush1.msra.mxu0 0.0
        %402 = vmatprep.subr.mxu0 0.0
        %403 = vmatpush1.msra.mxu0 0.0
        %404 = vmatprep.subr.mxu0 0.0
        %405 = vmatpush1.msra.mxu0 0.0
        %406 = vmatprep.subr.mxu0 0.0
        %407 = vmatpush1.msra.mxu0 0.0
        %408 = vmatprep.mubr.f32.mxu0 0.0
        %409 = vmatmul.mubr.f32.gmra.mrb[0].mxu0 %v339
        %v410 = vpop.f32.mrb[0].mxu0
        %v411 = vadd.f32 %v335, %v410
        %v412 = vpop.f32.mrb[0].mxu0
        %413 = vmatprep.mubr.f32.mxu0 0.0
        %414 = vmatmul.mubr.f32.gmra.mrb[0].mxu0 %v342
        %v415 = vpop.f32.mrb[0].mxu0
        %v416 = vadd.f32 %v335, %v415
        %v417 = vpop.f32.mrb[0].mxu0
        %418 = vdwg.mxu0
        %v419 = vmax.f32 %v411, 0.0
        %v420 = vmax.f32 %v416, 0.0
        %v421 = vld [vmem:[#allocation4] sm:$0xff]
        %v422 = vld [vmem:[#allocation4 + $0x8] sm:$0xff]
        %v423 = vld [vmem:[#allocation4 + $0x10] sm:$0xff]
        %v424 = vld [vmem:[#allocation4 + $0x18] sm:$0xff]
        %v425 = vld [vmem:[%s4] sm:$0x1]
        %v427 = vlaneseq
        %v428 = vshrl.u32 %v427, 7
        %v429 = vsub.s32 0, %v428
        %v430 = vrot.slane %v425, %v429
        %v433 = vsel %vm337, %v419, 0
        %v436 = vsel %vm337, %v420, 0
        %438 = vmatprep.subr.mxu0 0.0
        %439 = vmatpush1.msra.mxu0 %v421
        %440 = vmatprep.subr.mxu0 0.0
        %441 = vmatpush1.msra.mxu0 %v422
        %442 = vmatprep.subr.mxu0 0.0
        %443 = vmatpush1.msra.mxu0 %v423
        %444 = vmatprep.subr.mxu0 0.0
        %445 = vmatpush1.msra.mxu0 %v424
        %446 = vmatprep.subr.mxu0 0.0
        %447 = vmatpush1.msra.mxu0 0.0
        %448 = vmatprep.subr.mxu0 0.0
        %449 = vmatpush1.msra.mxu0 0.0
        %450 = vmatprep.subr.mxu0 0.0
        %451 = vmatpush1.msra.mxu0 0.0
        %452 = vmatprep.subr.mxu0 0.0
        %453 = vmatpush1.msra.mxu0 0.0
        %454 = vmatprep.subr.mxu0 0.0
        %455 = vmatpush1.msra.mxu0 0.0
        %456 = vmatprep.subr.mxu0 0.0
        %457 = vmatpush1.msra.mxu0 0.0
        %458 = vmatprep.subr.mxu0 0.0
        %459 = vmatpush1.msra.mxu0 0.0
        %460 = vmatprep.subr.mxu0 0.0
        %461 = vmatpush1.msra.mxu0 0.0
        %462 = vmatprep.subr.mxu0 0.0
        %463 = vmatpush1.msra.mxu0 0.0
        %464 = vmatprep.subr.mxu0 0.0
        %465 = vmatpush1.msra.mxu0 0.0
        %466 = vmatprep.subr.mxu0 0.0
        %467 = vmatpush1.msra.mxu0 0.0
        %468 = vmatprep.subr.mxu0 0.0
        %469 = vmatpush1.msra.mxu0 0.0
        %470 = vmatprep.subr.mxu0 0.0
        %471 = vmatpush1.msra.mxu0 0.0
        %472 = vmatprep.subr.mxu0 0.0
        %473 = vmatpush1.msra.mxu0 0.0
        %474 = vmatprep.subr.mxu0 0.0
        %475 = vmatpush1.msra.mxu0 0.0
        %476 = vmatprep.subr.mxu0 0.0
        %477 = vmatpush1.msra.mxu0 0.0
        %478 = vmatprep.subr.mxu0 0.0
        %479 = vmatpush1.msra.mxu0 0.0
        %480 = vmatprep.subr.mxu0 0.0
        %481 = vmatpush1.msra.mxu0 0.0
        %482 = vmatprep.subr.mxu0 0.0
        %483 = vmatpush1.msra.mxu0 0.0
        %484 = vmatprep.subr.mxu0 0.0
        %485 = vmatpush1.msra.mxu0 0.0
        %486 = vmatprep.subr.mxu0 0.0
        %487 = vmatpush1.msra.mxu0 0.0
        %488 = vmatprep.subr.mxu0 0.0
        %489 = vmatpush1.msra.mxu0 0.0
        %490 = vmatprep.subr.mxu0 0.0
        %491 = vmatpush1.msra.mxu0 0.0
        %492 = vmatprep.subr.mxu0 0.0
        %493 = vmatpush1.msra.mxu0 0.0
        %494 = vmatprep.subr.mxu0 0.0
        %495 = vmatpush1.msra.mxu0 0.0
        %496 = vmatprep.subr.mxu0 0.0
        %497 = vmatpush1.msra.mxu0 0.0
        %498 = vmatprep.subr.mxu0 0.0
        %499 = vmatpush1.msra.mxu0 0.0
        %500 = vmatprep.subr.mxu0 0.0
        %501 = vmatpush1.msra.mxu0 0.0
        %502 = vmatprep.mubr.f32.mxu0 0.0
        %503 = vmatmul.mubr.f32.gmra.mrb[0].mxu0 %v433
        %v504 = vpop.f32.mrb[0].mxu0
        %v505 = vadd.f32 %v430, %v504
        %v506 = vpop.f32.mrb[0].mxu0
        %507 = vmatprep.mubr.f32.mxu0 0.0
        %508 = vmatmul.mubr.f32.gmra.mrb[0].mxu0 %v436
        %v509 = vpop.f32.mrb[0].mxu0
        %v510 = vadd.f32 %v430, %v509
        %v511 = vpop.f32.mrb[0].mxu0
        %512 = vdwg.mxu0
        %v513 = vmax.f32 %v505, 0.0
        %v514 = vmax.f32 %v510, 0.0
        %v515 = vld [vmem:[%s5] sm:$0xff]
        %v516 = vld [vmem:[%s5 + $0x8] sm:$0xff]
        %v517 = vld [vmem:[%s5 + $0x10] sm:$0xff]
        %v518 = vld [vmem:[%s5 + $0x18] sm:$0xff]
        %v519 = vld [vmem:[%s6] sm:$0x1]
        %v521 = vlaneseq
        %v522 = vshrl.u32 %v521, 7
        %v523 = vsub.s32 0, %v522
        %v524 = vrot.slane %v519, %v523
        %v527 = vsel %vm337, %v513, 0
        %v530 = vsel %vm337, %v514, 0
        %532 = vmatprep.subr.mxu0 0.0
        %533 = vmatpush1.msra.mxu0 %v515
        %534 = vmatprep.subr.mxu0 0.0
        %535 = vmatpush1.msra.mxu0 %v516
        %536 = vmatprep.subr.mxu0 0.0
        %537 = vmatpush1.msra.mxu0 %v517
        %538 = vmatprep.subr.mxu0 0.0
        %539 = vmatpush1.msra.mxu0 %v518
        %540 = vmatprep.subr.mxu0 0.0
        %541 = vmatpush1.msra.mxu0 0.0
        %542 = vmatprep.subr.mxu0 0.0
        %543 = vmatpush1.msra.mxu0 0.0
        %544 = vmatprep.subr.mxu0 0.0
        %545 = vmatpush1.msra.mxu0 0.0
        %546 = vmatprep.subr.mxu0 0.0
        %547 = vmatpush1.msra.mxu0 0.0
        %548 = vmatprep.subr.mxu0 0.0
        %549 = vmatpush1.msra.mxu0 0.0
        %550 = vmatprep.subr.mxu0 0.0
        %551 = vmatpush1.msra.mxu0 0.0
        %552 = vmatprep.subr.mxu0 0.0
        %553 = vmatpush1.msra.mxu0 0.0
        %554 = vmatprep.subr.mxu0 0.0
        %555 = vmatpush1.msra.mxu0 0.0
        %556 = vmatprep.subr.mxu0 0.0
        %557 = vmatpush1.msra.mxu0 0.0
        %558 = vmatprep.subr.mxu0 0.0
        %559 = vmatpush1.msra.mxu0 0.0
        %560 = vmatprep.subr.mxu0 0.0
        %561 = vmatpush1.msra.mxu0 0.0
        %562 = vmatprep.subr.mxu0 0.0
        %563 = vmatpush1.msra.mxu0 0.0
        %564 = vmatprep.subr.mxu0 0.0
        %565 = vmatpush1.msra.mxu0 0.0
        %566 = vmatprep.subr.mxu0 0.0
        %567 = vmatpush1.msra.mxu0 0.0
        %568 = vmatprep.subr.mxu0 0.0
        %569 = vmatpush1.msra.mxu0 0.0
        %570 = vmatprep.subr.mxu0 0.0
        %571 = vmatpush1.msra.mxu0 0.0
        %572 = vmatprep.subr.mxu0 0.0
        %573 = vmatpush1.msra.mxu0 0.0
        %574 = vmatprep.subr.mxu0 0.0
        %575 = vmatpush1.msra.mxu0 0.0
        %576 = vmatprep.subr.mxu0 0.0
        %577 = vmatpush1.msra.mxu0 0.0
        %578 = vmatprep.subr.mxu0 0.0
        %579 = vmatpush1.msra.mxu0 0.0
        %580 = vmatprep.subr.mxu0 0.0
        %581 = vmatpush1.msra.mxu0 0.0
        %582 = vmatprep.subr.mxu0 0.0
        %583 = vmatpush1.msra.mxu0 0.0
        %584 = vmatprep.subr.mxu0 0.0
        %585 = vmatpush1.msra.mxu0 0.0
        %586 = vmatprep.subr.mxu0 0.0
        %587 = vmatpush1.msra.mxu0 0.0
        %588 = vmatprep.subr.mxu0 0.0
        %589 = vmatpush1.msra.mxu0 0.0
        %590 = vmatprep.subr.mxu0 0.0
        %591 = vmatpush1.msra.mxu0 0.0
        %592 = vmatprep.subr.mxu0 0.0
        %593 = vmatpush1.msra.mxu0 0.0
        %594 = vmatprep.subr.mxu0 0.0
        %595 = vmatpush1.msra.mxu0 0.0
        %596 = vmatprep.mubr.f32.mxu0 0.0
        %597 = vmatmul.mubr.f32.gmra.mrb[0].mxu0 %v527
        %v598 = vpop.f32.mrb[0].mxu0
        %v599 = vadd.f32 %v524, %v598
        %v600 = vpop.f32.mrb[0].mxu0
        %601 = vmatprep.mubr.f32.mxu0 0.0
        %602 = vmatmul.mubr.f32.gmra.mrb[0].mxu0 %v530
        %v603 = vpop.f32.mrb[0].mxu0
        %v604 = vadd.f32 %v524, %v603
        %v605 = vpop.f32.mrb[0].mxu0
        %606 = vdwg.mxu0
        %vm607 = vcmask 31744
        %608 = vst.msk [vmem:[%s313] sm:$0xff] %vm607, %v599
        %609 = vst.msk [vmem:[%s313 + $0x8] sm:$0xff] %vm607, %v604
        %s610 = sand.u32 %s182, 1
        %s611 = sand.u32 %s182, 1
        %s612 = smul.addr %s611, 16
        %s613 = scalar_lea.vmem [#allocation6], %s612
        // Predicated region
        $region57: #{tpu_custom_call.1} parent=47 // pred_check
          %p614 = pneg %p192
        $region58: #{tpu_custom_call.1} parent=47 // pred_check_branch
          %616 = sbr.rel (%p614) target = $region60
        $region59: #{tpu_custom_call.1} parent=47 // pred_region
          %s617 = smul.u32 2, %s22
          %s618 = ssub.s32 3, %s617
          %p619 = scmp.lt.s32.totalorder %s618, 2
          %s620 = scalar_select %p619, %s618, 2
          %s621 = smul.u32 128, %s620
          %p622 = scmp.ne.s32.totalorder 0, %s621
          %s623 = smul.addr %s617, 8
          %s624 = scalar_lea.vmem %s7, %s623
          // Predicated region
          $region61: #{tpu_custom_call.1} parent=59 // pred_check
            %p625 = pneg %p622
          $region62: #{tpu_custom_call.1} parent=59 // pred_check_branch
            %627 = sbr.rel (%p625) target = $region64
          $region63: #{tpu_custom_call.1} parent=59 // pred_region
            // Predicated region
            $region65: #{tpu_custom_call.1} parent=63 // pred_check
              _
            $region66: #{tpu_custom_call.1} parent=63 // pred_check_branch
              %629 = sbr.rel (0) target = $region68
            $region67: #{tpu_custom_call.1} parent=63 // pred_region
              // Predicated region
              $region87: #{tpu_custom_call.1} parent=67 // pred_check
                _
              $region88: #{tpu_custom_call.1} parent=67 // pred_check_branch
                %680 = sbr.rel (0) target = $region90
              $region89: #{tpu_custom_call.1} parent=67 // pred_region
                %s681 = sshrl.u32 %s620, 1
                // While loop
                $region91: #{tpu_custom_call.1} parent=89 // loop_pre_header
                  _
                $region92: #{tpu_custom_call.1} parent=89 // loop_header
                  %s683 = sphi 0, %s685
                  %p684 = scmp.ge.s32.totalorder %s683, %s681
                  %s688 = sphi 0, %s697
                  %s689 = sphi %s613, %s700
                  %s690 = sphi %s624, %s701
                $region93: #{tpu_custom_call.1} parent=89 // loop_header_branch
                  %687 = sbr.rel (%p684) target = $region97
                $region94: #{tpu_custom_call.1} parent=89 // loop_body
                  %v691 = vld [vmem:[%s689] sm:$0xff]
                  %692 = vst [vmem:[%s690] sm:$0xff] %v691
                  %v693 = vld [vmem:[%s689 + $0x8] sm:$0xff]
                  %694 = vst [vmem:[%s690 + $0x8] sm:$0xff] %v693
                  %s695 = sadd.s32 1, %s688
                  %p696 = scmp.ge.s32.totalorder %s695, %s681
                  %s697 = scalar_select %p696, 0, %s695
                  %s698 = smul.u32 %s697, 16
                  %s699 = smul.u32 %s697, 16
                  %s700 = scalar_lea.vmem %s613, %s698 [#allocation6]
                  %s701 = scalar_lea.vmem %s624, %s699
                $region95: #{tpu_custom_call.1} parent=89 // loop_footer
                  %s685 = sadd.s32 %s683, 1
                $region96: #{tpu_custom_call.1} parent=89 // loop_footer_branch
                  %682 = sbr.rel target = $region92
                $region97: #{tpu_custom_call.1} parent=89 // loop_exit
                  _
                %s702 = sshrl.u32 %s620, 1
                %s703 = sand.u32 %s620, 1
                %s704 = smul.u32 %s702, 2
                %s705 = smul.u32 8, %s704
                %s706 = scalar_lea.vmem %s613, %s705 [#allocation6]
                %s707 = smul.u32 8, %s704
                %s708 = scalar_lea.vmem %s624, %s707
                // While loop
                $region98: #{tpu_custom_call.1} parent=89 // loop_pre_header
                  _
                $region99: #{tpu_custom_call.1} parent=89 // loop_header
                  %s710 = sphi 0, %s712
                  %p711 = scmp.ge.s32.totalorder %s710, %s703
                  %s715 = sphi 0, %s722
                  %s716 = sphi %s706, %s725
                  %s717 = sphi %s708, %s726
                $region100: #{tpu_custom_call.1} parent=89 // loop_header_branch
                  %714 = sbr.rel (%p711) target = $region104
                $region101: #{tpu_custom_call.1} parent=89 // loop_body
                  %v718 = vld [vmem:[%s716] sm:$0xff]
                  %719 = vst [vmem:[%s717] sm:$0xff] %v718
                  %s720 = sadd.s32 1, %s715
                  %p721 = scmp.ge.s32.totalorder %s720, %s703
                  %s722 = scalar_select %p721, 0, %s720
                  %s723 = smul.u32 %s722, 8
                  %s724 = smul.u32 %s722, 8
                  %s725 = scalar_lea.vmem %s706, %s723 [#allocation6]
                  %s726 = scalar_lea.vmem %s708, %s724
                $region102: #{tpu_custom_call.1} parent=89 // loop_footer
                  %s712 = sadd.s32 %s710, 1
                $region103: #{tpu_custom_call.1} parent=89 // loop_footer_branch
                  %709 = sbr.rel target = $region99
                $region104: #{tpu_custom_call.1} parent=89 // loop_exit
                  _
              $region90: #{tpu_custom_call.1} parent=67 // pred_fallthru
                _
              // Predicated region
              $region105: #{tpu_custom_call.1} parent=67 // pred_check
                _
              $region106: #{tpu_custom_call.1} parent=67 // pred_check_branch
                %728 = sbr.rel target = $region108
              $region107: #{tpu_custom_call.1} parent=67 // pred_region
                _
              $region108: #{tpu_custom_call.1} parent=67 // pred_fallthru
                _
            $region68: #{tpu_custom_call.1} parent=63 // pred_fallthru
              _
            // Predicated region
            $region69: #{tpu_custom_call.1} parent=63 // pred_check
              _
            $region70: #{tpu_custom_call.1} parent=63 // pred_check_branch
              %631 = sbr.rel target = $region72
            $region71: #{tpu_custom_call.1} parent=63 // pred_region
              %s633 = sshrl.u32 %s620, 1
              // While loop
              $region73: #{tpu_custom_call.1} parent=71 // loop_pre_header
                _
              $region74: #{tpu_custom_call.1} parent=71 // loop_header
                %s635 = sphi 0, %s637
                %p636 = scmp.ge.s32.totalorder %s635, %s633
                %s640 = sphi 0, %s649
                %s641 = sphi %s613, %s652
                %s642 = sphi %s624, %s653
              $region75: #{tpu_custom_call.1} parent=71 // loop_header_branch
                %639 = sbr.rel (%p636) target = $region79
              $region76: #{tpu_custom_call.1} parent=71 // loop_body
                %v643 = vld [vmem:[%s641] sm:$0xff]
                %644 = vst [vmem:[%s642] sm:$0xff] %v643
                %v645 = vld [vmem:[%s641 + $0x8] sm:$0xff]
                %646 = vst [vmem:[%s642 + $0x8] sm:$0xff] %v645
                %s647 = sadd.s32 1, %s640
                %p648 = scmp.ge.s32.totalorder %s647, %s633
                %s649 = scalar_select %p648, 0, %s647
                %s650 = smul.u32 %s649, 16
                %s651 = smul.u32 %s649, 16
                %s652 = scalar_lea.vmem %s613, %s650 [#allocation6]
                %s653 = scalar_lea.vmem %s624, %s651
              $region77: #{tpu_custom_call.1} parent=71 // loop_footer
                %s637 = sadd.s32 %s635, 1
              $region78: #{tpu_custom_call.1} parent=71 // loop_footer_branch
                %634 = sbr.rel target = $region74
              $region79: #{tpu_custom_call.1} parent=71 // loop_exit
                _
              %s654 = sshrl.u32 %s620, 1
              %s655 = sand.u32 %s620, 1
              %s656 = smul.u32 %s654, 2
              %s657 = smul.u32 8, %s656
              %s658 = scalar_lea.vmem %s613, %s657 [#allocation6]
              %s659 = smul.u32 8, %s656
              %s660 = scalar_lea.vmem %s624, %s659
              // While loop
              $region80: #{tpu_custom_call.1} parent=71 // loop_pre_header
                _
              $region81: #{tpu_custom_call.1} parent=71 // loop_header
                %s662 = sphi 0, %s664
                %p663 = scmp.ge.s32.totalorder %s662, %s655
                %s667 = sphi 0, %s674
                %s668 = sphi %s658, %s677
                %s669 = sphi %s660, %s678
              $region82: #{tpu_custom_call.1} parent=71 // loop_header_branch
                %666 = sbr.rel (%p663) target = $region86
              $region83: #{tpu_custom_call.1} parent=71 // loop_body
                %v670 = vld [vmem:[%s668] sm:$0xff]
                %671 = vst [vmem:[%s669] sm:$0xff] %v670
                %s672 = sadd.s32 1, %s667
                %p673 = scmp.ge.s32.totalorder %s672, %s655
                %s674 = scalar_select %p673, 0, %s672
                %s675 = smul.u32 %s674, 8
                %s676 = smul.u32 %s674, 8
                %s677 = scalar_lea.vmem %s658, %s675 [#allocation6]
                %s678 = scalar_lea.vmem %s660, %s676
              $region84: #{tpu_custom_call.1} parent=71 // loop_footer
                %s664 = sadd.s32 %s662, 1
              $region85: #{tpu_custom_call.1} parent=71 // loop_footer_branch
                %661 = sbr.rel target = $region81
              $region86: #{tpu_custom_call.1} parent=71 // loop_exit
                _
            $region72: #{tpu_custom_call.1} parent=63 // pred_fallthru
              _
          $region64: #{tpu_custom_call.1} parent=59 // pred_fallthru
            _
          %729 = vnop
        $region60: #{tpu_custom_call.1} parent=47 // pred_fallthru
          _
      $region48: #{tpu_custom_call.1} parent=5 // pred_fallthru
        _
      %p730 = scmp.le.s32.totalorder 2, %s17
      // Predicated region
      $region109: #{tpu_custom_call.1} parent=5 // pred_check
        %p731 = pneg %p730
      $region110: #{tpu_custom_call.1} parent=5 // pred_check_branch
        %733 = sbr.rel (%p731) target = $region112
      $region111: #{tpu_custom_call.1} parent=5 // pred_region
        %s734 = ssub.s32 %s17, 2
        // Predicated region
        $region113: #{tpu_custom_call.1} parent=111 // pred_check
          %p735 = pneg %p198
        $region114: #{tpu_custom_call.1} parent=111 // pred_check_branch
          %737 = sbr.rel (%p735) target = $region116
        $region115: #{tpu_custom_call.1} parent=111 // pred_region
          %s738 = sand.u32 %s183, 1
          %s739 = sand.u32 %s183, 1
          %s740 = smul.addr %s739, 16
          %s741 = scalar_lea.vmem [#allocation6], %s740
        $region116: #{tpu_custom_call.1} parent=111 // pred_fallthru
          _
      $region112: #{tpu_custom_call.1} parent=5 // pred_fallthru
        _
    $region6: #{tpu_custom_call.1} parent=1 // loop_footer
      %s21 = sadd.s32 1, %s17
    $region7: #{tpu_custom_call.1} parent=1 // loop_footer_branch
      %16 = sbr.rel target = $region3
    $region8: #{tpu_custom_call.1} parent=1 // loop_exit
      _
    %742 = vsyncpa [#allocation3], 1
    %s743 = scalar_lea.sflag [#allocation3], 1
    %744 = vsyncpa %s743, 1
    %745 = vsyncpa [#allocation5], 1

</llo_original>
